<compile_context>
chip_gen: v6e
topology: v6e:2x2x1
jax: 0.10.0
libtpu: 0.0.40
codegen_flags: <defaults>
</compile_context>

<pallas_src>
import jax
import jax.numpy as jnp
from jax.experimental import pallas as pl
from jax.experimental.pallas import tpu as pltpu
import numpy as np

D = 8                 # Hilbert-space dimension (3 qubits)
N_STEPS = 8           # number of pulse time slices
DELTA_T = 0.1         # integration time step
EMB = 2 * D           # 16 : real embedding size of one DxD complex matrix
BIG = N_STEPS * EMB   # 128: block-diagonal batch of all N_STEPS embeddings


def _pulse_kernel(a_base_ref,   # VMEM (BIG, BIG) f32: I_8 (x) [[Hi,Hr],[-Hr,Hi]]
                  scale_ref,    # VMEM (BIG, 1)   f32: repeat(pulse*dt, EMB)
                  eye_ref,      # VMEM (BIG, BIG) f32: identity
                  u_ref):       # VMEM (EMB, BIG) f32: lane-dense output slab
    # a's k-th 16x16 diagonal block = real embedding of -i*H*pulse[k]*dt.
    a = a_base_ref[...] * scale_ref[...]          # (128,128) * (128,1) bcast
    eye = eye_ref[...]

    # expm of all N_STEPS diagonal blocks at once (block-diagonal structure is
    # closed under matmul): degree-8 Taylor via Paterson-Stockmeyer in B = A^3:
    #   E = P0 + B*(P1 + B*P2),  Pi = degree-<=2 polynomials in A (VALU only).
    # Serial MXU chain: A^2, A^3, B*P2, B*(P1 + B*P2)  -> 4 matmuls.
    a2 = jnp.dot(a, a, preferred_element_type=jnp.float32)
    a3 = jnp.dot(a2, a, preferred_element_type=jnp.float32)
    p0 = eye + a + 0.5 * a2
    p1 = (1.0 / 6.0) * eye + (1.0 / 24.0) * a + (1.0 / 120.0) * a2
    p2 = (1.0 / 720.0) * eye + (1.0 / 5040.0) * a + (1.0 / 40320.0) * a2
    inner = p1 + jnp.dot(a3, p2, preferred_element_type=jnp.float32)
    e = p0 + jnp.dot(a3, inner, preferred_element_type=jnp.float32)
    # TODO(synk): fixed-order Taylor without scaling-and-squaring assumes
    # ||H*p[k]*dt|| is small (true here); add scale/square for large pulses.

    # Fold the 8 per-step unitaries with a rolled block-diagonal product tree:
    # rolling e by s blocks (toward lower block indices, i.e. jnp.roll shift
    # of -s*EMB == BIG - s*EMB) along BOTH axes puts E_{k+s} on diagonal block
    # k, so diagonal block k of roll(e) @ e is E_{k+s} @ E_k (later time step
    # on the left).  Everything stays exactly block-diagonal, so no masking is
    # needed; after levels s = 1, 2, 4 the total product sits in block 0.
    for s in (1, 2, 4):
        shift = BIG - s * EMB
        g = pltpu.roll(pltpu.roll(e, shift, axis=0), shift, axis=1)
        e = jnp.dot(g, e, preferred_element_type=jnp.float32)

    u_ref[...] = e[:EMB, :]                       # lane-dense (16,128) store


def quantum_pulse_unitary(pulse, h_re, h_im):
    """Returns (U_re, U_im), the total evolution unitary as f32 planes."""
    # Constant layout prep (in a real module H is fixed, so a_base/eye_big
    # would be precomputed once at init): 16x16 real embedding of -i*H (up to
    # the per-step scalar) replicated into a 128x128 block diagonal.
    b16 = jnp.block([[h_im, h_re],
                     [-h_re, h_im]]).astype(jnp.float32)             # (16, 16)
    a_base = jnp.kron(jnp.eye(N_STEPS, dtype=jnp.float32), b16)      # (128,128)
    eye_big = jnp.eye(BIG, dtype=jnp.float32)                        # (128,128)
    # Tiny pulse-dependent per-row scale: rows of diagonal block k get
    # pulse[k] * dt.
    scale = jnp.repeat(pulse.astype(jnp.float32) * jnp.float32(DELTA_T),
                       EMB)[:, None]                                 # (128, 1)

    # Single invocation, whole arrays in VMEM (no grid / default BlockSpecs).
    u_slab = pl.pallas_call(
        _pulse_kernel,
        out_shape=jax.ShapeDtypeStruct((EMB, BIG), jnp.float32),
    )(a_base, scale, eye_big)

    u_emb = u_slab[:, :EMB]           # aligned (16,16) embedding of total U
    u_re = u_emb[:D, :D]
    u_im = u_emb[D:, :D]
    return u_re, u_im


def _reference_unitary(pulse, h_re, h_im):
    """Pure-JAX reference using complex expm."""
    H = h_re.astype(jnp.complex64) + 1j * h_im.astype(jnp.complex64)
    U = jnp.eye(D, dtype=jnp.complex64)
    for k in range(N_STEPS):
        U = jax.scipy.linalg.expm(-1j * H * pulse[k] * DELTA_T) @ U
    return U


if __name__ == "__main__":
    key = jax.random.PRNGKey(0)
    k1, k2, k3 = jax.random.split(key, 3)

    # Deterministic "parameters": pulse envelope (QuantumPulseDirect's
    # nn.Parameter of shape (n_steps,)) and a Hermitian Hamiltonian.
    pulse = 0.5 * jax.random.uniform(k1, (N_STEPS,), dtype=jnp.float32)
    m_re = jax.random.normal(k2, (D, D), dtype=jnp.float32)
    m_im = jax.random.normal(k3, (D, D), dtype=jnp.float32)
    h_re = 0.5 * (m_re + m_re.T)      # Hermitian: real part symmetric,
    h_im = 0.5 * (m_im - m_im.T)      #            imag part antisymmetric

    u_re, u_im = quantum_pulse_unitary(pulse, h_re, h_im)
    jax.block_until_ready((u_re, u_im))

    # Correctness check against dense complex expm reference.
    u_ref = _reference_unitary(pulse, h_re, h_im)
    got = np.asarray(u_re) + 1j * np.asarray(u_im)
    assert np.allclose(got, np.asarray(u_ref), atol=1e-4, rtol=1e-4), \
        "Pallas pulse unitary mismatch vs reference"

    print("KERNEL_OK")
</pallas_src>

<mosaic_0001>
module attributes {stable_mosaic.version = 11 : i64} {
  func.func @_pulse_kernel(%arg0: memref<128x128xf32, #tpu.memory_space<vmem>>, %arg1: memref<128x1xf32, #tpu.memory_space<vmem>>, %arg2: memref<128x128xf32, #tpu.memory_space<vmem>>, %arg3: memref<16x128xf32, #tpu.memory_space<vmem>>) attributes {dimension_semantics = [], scalar_prefetch = 0 : i64, scratch_operands = 0 : i64, tpu.core_type = #tpu.core_type<tc>} {
    %c0 = arith.constant 0 : index
    %c0_0 = arith.constant 0 : index
    %0 = vector.load %arg0[%c0, %c0_0] : memref<128x128xf32, #tpu.memory_space<vmem>>, vector<128x128xf32>
    %c0_1 = arith.constant 0 : index
    %c0_2 = arith.constant 0 : index
    %1 = vector.load %arg1[%c0_1, %c0_2] : memref<128x1xf32, #tpu.memory_space<vmem>>, vector<128x1xf32>
    %2 = vector.broadcast %1 : vector<128x1xf32> to vector<128x128xf32>
    %3 = arith.mulf %0, %2 : vector<128x128xf32>
    %c0_3 = arith.constant 0 : index
    %c0_4 = arith.constant 0 : index
    %4 = vector.load %arg2[%c0_3, %c0_4] : memref<128x128xf32, #tpu.memory_space<vmem>>, vector<128x128xf32>
    %cst = arith.constant dense<0.000000e+00> : vector<128x128xf32>
    %5 = tpu.matmul %3, %3, %cst {dimension_numbers = #tpu.dot_dimension_numbers<[1], [0], [0], [1], [0, 0, 1, 1], [], []>} : vector<128x128xf32>, vector<128x128xf32>, vector<128x128xf32> -> vector<128x128xf32>
    %cst_5 = arith.constant dense<0.000000e+00> : vector<128x128xf32>
    %6 = tpu.matmul %5, %3, %cst_5 {dimension_numbers = #tpu.dot_dimension_numbers<[1], [0], [0], [1], [0, 0, 1, 1], [], []>} : vector<128x128xf32>, vector<128x128xf32>, vector<128x128xf32> -> vector<128x128xf32>
    %7 = arith.addf %4, %3 : vector<128x128xf32>
    %cst_6 = arith.constant 5.000000e-01 : f32
    %8 = vector.broadcast %cst_6 : f32 to vector<128x128xf32>
    %9 = arith.mulf %8, %5 : vector<128x128xf32>
    %10 = arith.addf %7, %9 : vector<128x128xf32>
    %cst_7 = arith.constant 0.166666672 : f32
    %11 = vector.broadcast %cst_7 : f32 to vector<128x128xf32>
    %12 = arith.mulf %11, %4 : vector<128x128xf32>
    %cst_8 = arith.constant 0.0416666679 : f32
    %13 = vector.broadcast %cst_8 : f32 to vector<128x128xf32>
    %14 = arith.mulf %13, %3 : vector<128x128xf32>
    %15 = arith.addf %12, %14 : vector<128x128xf32>
    %cst_9 = arith.constant 0.00833333377 : f32
    %16 = vector.broadcast %cst_9 : f32 to vector<128x128xf32>
    %17 = arith.mulf %16, %5 : vector<128x128xf32>
    %18 = arith.addf %15, %17 : vector<128x128xf32>
    %cst_10 = arith.constant 0.00138888892 : f32
    %19 = vector.broadcast %cst_10 : f32 to vector<128x128xf32>
    %20 = arith.mulf %19, %4 : vector<128x128xf32>
    %cst_11 = arith.constant 1.98412701E-4 : f32
    %21 = vector.broadcast %cst_11 : f32 to vector<128x128xf32>
    %22 = arith.mulf %21, %3 : vector<128x128xf32>
    %23 = arith.addf %20, %22 : vector<128x128xf32>
    %cst_12 = arith.constant 2.48015876E-5 : f32
    %24 = vector.broadcast %cst_12 : f32 to vector<128x128xf32>
    %25 = arith.mulf %24, %5 : vector<128x128xf32>
    %26 = arith.addf %23, %25 : vector<128x128xf32>
    %cst_13 = arith.constant dense<0.000000e+00> : vector<128x128xf32>
    %27 = tpu.matmul %6, %26, %cst_13 {dimension_numbers = #tpu.dot_dimension_numbers<[1], [0], [0], [1], [0, 0, 1, 1], [], []>} : vector<128x128xf32>, vector<128x128xf32>, vector<128x128xf32> -> vector<128x128xf32>
    %28 = arith.addf %18, %27 : vector<128x128xf32>
    %cst_14 = arith.constant dense<0.000000e+00> : vector<128x128xf32>
    %29 = tpu.matmul %6, %28, %cst_14 {dimension_numbers = #tpu.dot_dimension_numbers<[1], [0], [0], [1], [0, 0, 1, 1], [], []>} : vector<128x128xf32>, vector<128x128xf32>, vector<128x128xf32> -> vector<128x128xf32>
    %30 = arith.addf %10, %29 : vector<128x128xf32>
    %c112_i32 = arith.constant 112 : i32
    %31 = tpu.dynamic_rotate %30 by %c112_i32 dim 0 : vector<128x128xf32>, i32 -> vector<128x128xf32>
    %c112_i32_15 = arith.constant 112 : i32
    %32 = tpu.dynamic_rotate %31 by %c112_i32_15 dim 1 : vector<128x128xf32>, i32 -> vector<128x128xf32>
    %cst_16 = arith.constant dense<0.000000e+00> : vector<128x128xf32>
    %33 = tpu.matmul %32, %30, %cst_16 {dimension_numbers = #tpu.dot_dimension_numbers<[1], [0], [0], [1], [0, 0, 1, 1], [], []>} : vector<128x128xf32>, vector<128x128xf32>, vector<128x128xf32> -> vector<128x128xf32>
    %c96_i32 = arith.constant 96 : i32
    %34 = tpu.dynamic_rotate %33 by %c96_i32 dim 0 : vector<128x128xf32>, i32 -> vector<128x128xf32>
    %c96_i32_17 = arith.constant 96 : i32
    %35 = tpu.dynamic_rotate %34 by %c96_i32_17 dim 1 : vector<128x128xf32>, i32 -> vector<128x128xf32>
    %cst_18 = arith.constant dense<0.000000e+00> : vector<128x128xf32>
    %36 = tpu.matmul %35, %33, %cst_18 {dimension_numbers = #tpu.dot_dimension_numbers<[1], [0], [0], [1], [0, 0, 1, 1], [], []>} : vector<128x128xf32>, vector<128x128xf32>, vector<128x128xf32> -> vector<128x128xf32>
    %c64_i32 = arith.constant 64 : i32
    %37 = tpu.dynamic_rotate %36 by %c64_i32 dim 0 : vector<128x128xf32>, i32 -> vector<128x128xf32>
    %c64_i32_19 = arith.constant 64 : i32
    %38 = tpu.dynamic_rotate %37 by %c64_i32_19 dim 1 : vector<128x128xf32>, i32 -> vector<128x128xf32>
    %cst_20 = arith.constant dense<0.000000e+00> : vector<128x128xf32>
    %39 = tpu.matmul %38, %36, %cst_20 {dimension_numbers = #tpu.dot_dimension_numbers<[1], [0], [0], [1], [0, 0, 1, 1], [], []>} : vector<128x128xf32>, vector<128x128xf32>, vector<128x128xf32> -> vector<128x128xf32>
    %40 = vector.extract_strided_slice %39 {offsets = [0, 0], sizes = [16, 128], strides = [1, 1]} : vector<128x128xf32> to vector<16x128xf32>
    %c0_21 = arith.constant 0 : index
    %c0_22 = arith.constant 0 : index
    %41 = vector.load %arg3[%c0_21, %c0_22] : memref<16x128xf32, #tpu.memory_space<vmem>>, vector<16x128xf32>
    tpu.vector_store %arg3[%c0_21, %c0_22], %40 {strides = array<i32>} : memref<16x128xf32, #tpu.memory_space<vmem>>, vector<16x128xf32>,
    return
  }
}

</mosaic_0001>

<llo_original>
// kernel: tpu_custom_call.1
$region0: #{tpu_custom_call.1}
  #allocation0 [shape = 'u32[]', space=smem, size = 0x4, offset = 0x4, fixed_abs, tag = 'smem constant byte address 0x4 - core index']
  #allocation1 [shape = 'u32[144,128]{1,0:T(1,128)}', space=vmem, size = 0x12000, scoped, tag = 'internal scratch']
  %s0 = inlined_call_operand.vmem [shape: f32[128,128], index: 0, kind: input, shape index: {}]
  %s1 = inlined_call_operand.vmem [shape: f32[128,1], index: 1, kind: input, shape index: {}]
  %s2 = inlined_call_operand.hbm [shape: f32[128,128], index: 2, kind: input, shape index: {}]
  %s3 = inlined_call_operand.hbm [shape: f32[16,128], index: 3, kind: output, shape index: {}]
  %s4 = sld [smem:[#allocation0]]
  $region26: #{tpu_custom_call.1} parent=0
    _
  %s6 = ssub.s32 1, %s4
  %s7 = scalar_select 0, %s6, %s4
  $region1: #{tpu_custom_call.1} parent=0
    #allocation2 [shape = 'u8[65536]{0}', space=vmem, size = 0x10000, scoped, tag = 'input window, operand 2, single buffered']
    #allocation3 [shape = 's32[1]{0}', space=sflag, size = 0x4, scoped, tag = 'scoped memory for tpu_custom_call.1']
    #allocation4 [shape = 's32[1]{0}', space=sflag, size = 0x4, scoped, tag = 'scoped memory for tpu_custom_call.1']
    #allocation5 [shape = 'u8[8192]{0}', space=vmem, size = 0x2000, scoped, tag = 'output window, operand 0, single buffered']
    %8 = vsyncpa [#allocation3], 0
    %9 = vsyncpa [#allocation4], 0
    // Predicated region
    $region2: #{tpu_custom_call.1} parent=1 // pred_check
      _
    $region3: #{tpu_custom_call.1} parent=1 // pred_check_branch
      %11 = sbr.rel (0) target = $region5
    $region4: #{tpu_custom_call.1} parent=1 // pred_region
      _
    $region5: #{tpu_custom_call.1} parent=1 // pred_fallthru
      _
    // Predicated region
    $region6: #{tpu_custom_call.1} parent=1 // pred_check
      _
    $region7: #{tpu_custom_call.1} parent=1 // pred_check_branch
      %13 = sbr.rel (0) target = $region9
    $region8: #{tpu_custom_call.1} parent=1 // pred_region
      _
    $region9: #{tpu_custom_call.1} parent=1 // pred_fallthru
      _
    // Predicated region
    $region10: #{tpu_custom_call.1} parent=1 // pred_check
      _
    $region11: #{tpu_custom_call.1} parent=1 // pred_check_branch
      %15 = sbr.rel (0) target = $region13
    $region12: #{tpu_custom_call.1} parent=1 // pred_region
      %s17 = ssub.s32 2048, 2048
      %18 = vsyncadd [#allocation3], %s17
      %s19 = sshll.u32 [#allocation2], 4
      %s20 = int_to_ptr.vmem [resolvable:$true] %s19
      %25 = dma.hbm_to_vmem [thread:$0]  %s2, 2048, %s20, [#allocation3], 128, 128, 8
    $region13: #{tpu_custom_call.1} parent=1 // pred_fallthru
      _
    // Predicated region
    $region14: #{tpu_custom_call.1} parent=1 // pred_check
      _
    $region15: #{tpu_custom_call.1} parent=1 // pred_check_branch
      %27 = sbr.rel (0) target = $region17
    $region16: #{tpu_custom_call.1} parent=1 // pred_region
      %28 = dma.done [#allocation3], 2048
    $region17: #{tpu_custom_call.1} parent=1 // pred_fallthru
      _
    %v29 = vld [vmem:[%s0] sm:$0xff]
    %v30 = vld [vmem:[%s0 + $0x8] sm:$0xff]
    %v31 = vld [vmem:[%s0 + $0x10] sm:$0xff]
    %v32 = vld [vmem:[%s0 + $0x18] sm:$0xff]
    %v33 = vld [vmem:[%s0 + $0x20] sm:$0xff]
    %v34 = vld [vmem:[%s0 + $0x28] sm:$0xff]
    %v35 = vld [vmem:[%s0 + $0x30] sm:$0xff]
    %v36 = vld [vmem:[%s0 + $0x38] sm:$0xff]
    %v37 = vld [vmem:[%s0 + $0x40] sm:$0xff]
    %v38 = vld [vmem:[%s0 + $0x48] sm:$0xff]
    %v39 = vld [vmem:[%s0 + $0x50] sm:$0xff]
    %v40 = vld [vmem:[%s0 + $0x58] sm:$0xff]
    %v41 = vld [vmem:[%s0 + $0x60] sm:$0xff]
    %v42 = vld [vmem:[%s0 + $0x68] sm:$0xff]
    %v43 = vld [vmem:[%s0 + $0x70] sm:$0xff]
    %v44 = vld [vmem:[%s0 + $0x78] sm:$0xff]
    %v45 = vld [vmem:[%s1] sm:$0xff]
    %v46 = vld [vmem:[%s1 + $0x8] sm:$0xff]
    %v47 = vld [vmem:[%s1 + $0x10] sm:$0xff]
    %v48 = vld [vmem:[%s1 + $0x18] sm:$0xff]
    %v49 = vld [vmem:[%s1 + $0x20] sm:$0xff]
    %v50 = vld [vmem:[%s1 + $0x28] sm:$0xff]
    %v51 = vld [vmem:[%s1 + $0x30] sm:$0xff]
    %v52 = vld [vmem:[%s1 + $0x38] sm:$0xff]
    %v53 = vld [vmem:[%s1 + $0x40] sm:$0xff]
    %v54 = vld [vmem:[%s1 + $0x48] sm:$0xff]
    %v55 = vld [vmem:[%s1 + $0x50] sm:$0xff]
    %v56 = vld [vmem:[%s1 + $0x58] sm:$0xff]
    %v57 = vld [vmem:[%s1 + $0x60] sm:$0xff]
    %v58 = vld [vmem:[%s1 + $0x68] sm:$0xff]
    %v59 = vld [vmem:[%s1 + $0x70] sm:$0xff]
    %v60 = vld [vmem:[%s1 + $0x78] sm:$0xff]
    %62 = vset.pattern.permute.xlu0 0
    %63 = vperm.xlu0 %62, %v45
    %v64 = vpop.permute.xlu0 %63
    %67 = vset.pattern.permute.xlu0 0
    %68 = vperm.xlu0 %67, %v46
    %v69 = vpop.permute.xlu0 %68
    %72 = vset.pattern.permute.xlu0 0
    %73 = vperm.xlu0 %72, %v47
    %v74 = vpop.permute.xlu0 %73
    %77 = vset.pattern.permute.xlu0 0
    %78 = vperm.xlu0 %77, %v48
    %v79 = vpop.permute.xlu0 %78
    %82 = vset.pattern.permute.xlu0 0
    %83 = vperm.xlu0 %82, %v49
    %v84 = vpop.permute.xlu0 %83
    %87 = vset.pattern.permute.xlu0 0
    %88 = vperm.xlu0 %87, %v50
    %v89 = vpop.permute.xlu0 %88
    %92 = vset.pattern.permute.xlu0 0
    %93 = vperm.xlu0 %92, %v51
    %v94 = vpop.permute.xlu0 %93
    %97 = vset.pattern.permute.xlu0 0
    %98 = vperm.xlu0 %97, %v52
    %v99 = vpop.permute.xlu0 %98
    %102 = vset.pattern.permute.xlu0 0
    %103 = vperm.xlu0 %102, %v53
    %v104 = vpop.permute.xlu0 %103
    %107 = vset.pattern.permute.xlu0 0
    %108 = vperm.xlu0 %107, %v54
    %v109 = vpop.permute.xlu0 %108
    %112 = vset.pattern.permute.xlu0 0
    %113 = vperm.xlu0 %112, %v55
    %v114 = vpop.permute.xlu0 %113
    %117 = vset.pattern.permute.xlu0 0
    %118 = vperm.xlu0 %117, %v56
    %v119 = vpop.permute.xlu0 %118
    %122 = vset.pattern.permute.xlu0 0
    %123 = vperm.xlu0 %122, %v57
    %v124 = vpop.permute.xlu0 %123
    %127 = vset.pattern.permute.xlu0 0
    %128 = vperm.xlu0 %127, %v58
    %v129 = vpop.permute.xlu0 %128
    %132 = vset.pattern.permute.xlu0 0
    %133 = vperm.xlu0 %132, %v59
    %v134 = vpop.permute.xlu0 %133
    %137 = vset.pattern.permute.xlu0 0
    %138 = vperm.xlu0 %137, %v60
    %v139 = vpop.permute.xlu0 %138
    %v141 = vmul.f32 %v29, %v64
    %v142 = vmul.f32 %v30, %v69
    %v143 = vmul.f32 %v31, %v74
    %v144 = vmul.f32 %v32, %v79
    %v145 = vmul.f32 %v33, %v84
    %v146 = vmul.f32 %v34, %v89
    %v147 = vmul.f32 %v35, %v94
    %v148 = vmul.f32 %v36, %v99
    %v149 = vmul.f32 %v37, %v104
    %v150 = vmul.f32 %v38, %v109
    %v151 = vmul.f32 %v39, %v114
    %v152 = vmul.f32 %v40, %v119
    %v153 = vmul.f32 %v41, %v124
    %v154 = vmul.f32 %v42, %v129
    %v155 = vmul.f32 %v43, %v134
    %v156 = vmul.f32 %v44, %v139
    %v157 = vld [vmem:[#allocation2] sm:$0xff]
    %v158 = vld [vmem:[#allocation2 + $0x8] sm:$0xff]
    %v159 = vld [vmem:[#allocation2 + $0x10] sm:$0xff]
    %v160 = vld [vmem:[#allocation2 + $0x18] sm:$0xff]
    %v161 = vld [vmem:[#allocation2 + $0x20] sm:$0xff]
    %v162 = vld [vmem:[#allocation2 + $0x28] sm:$0xff]
    %v163 = vld [vmem:[#allocation2 + $0x30] sm:$0xff]
    %v164 = vld [vmem:[#allocation2 + $0x38] sm:$0xff]
    %v165 = vld [vmem:[#allocation2 + $0x40] sm:$0xff]
    %v166 = vld [vmem:[#allocation2 + $0x48] sm:$0xff]
    %v167 = vld [vmem:[#allocation2 + $0x50] sm:$0xff]
    %v168 = vld [vmem:[#allocation2 + $0x58] sm:$0xff]
    %v169 = vld [vmem:[#allocation2 + $0x60] sm:$0xff]
    %v170 = vld [vmem:[#allocation2 + $0x68] sm:$0xff]
    %v171 = vld [vmem:[#allocation2 + $0x70] sm:$0xff]
    %v172 = vld [vmem:[#allocation2 + $0x78] sm:$0xff]
    %173 = vmatprep.subr.mxu0 0.0
    %174 = vmatpush1.msra.mxu0 %v156
    %175 = vmatprep.subr.mxu0 0.0
    %176 = vmatpush1.msra.mxu0 %v155
    %177 = vmatprep.subr.mxu0 0.0
    %178 = vmatpush1.msra.mxu0 %v154
    %179 = vmatprep.subr.mxu0 0.0
    %180 = vmatpush1.msra.mxu0 %v153
    %181 = vmatprep.subr.mxu0 0.0
    %182 = vmatpush1.msra.mxu0 %v152
    %183 = vmatprep.subr.mxu0 0.0
    %184 = vmatpush1.msra.mxu0 %v151
    %185 = vmatprep.subr.mxu0 0.0
    %186 = vmatpush1.msra.mxu0 %v150
    %187 = vmatprep.subr.mxu0 0.0
    %188 = vmatpush1.msra.mxu0 %v149
    %189 = vmatprep.subr.mxu0 0.0
    %190 = vmatpush1.msra.mxu0 %v148
    %191 = vmatprep.subr.mxu0 0.0
    %192 = vmatpush1.msra.mxu0 %v147
    %193 = vmatprep.subr.mxu0 0.0
    %194 = vmatpush1.msra.mxu0 %v146
    %195 = vmatprep.subr.mxu0 0.0
    %196 = vmatpush1.msra.mxu0 %v145
    %197 = vmatprep.subr.mxu0 0.0
    %198 = vmatpush1.msra.mxu0 %v144
    %199 = vmatprep.subr.mxu0 0.0
    %200 = vmatpush1.msra.mxu0 %v143
    %201 = vmatprep.subr.mxu0 0.0
    %202 = vmatpush1.msra.mxu0 %v142
    %203 = vmatprep.subr.mxu0 0.0
    %204 = vmatpush1.msra.mxu0 %v141
    %205 = vmatprep.subr.mxu0 0.0
    %206 = vmatpush2.msra.mxu0 0.0
    %207 = vmatprep.subr.mxu0 0.0
    %208 = vmatpush2.msra.mxu0 0.0
    %209 = vmatprep.subr.mxu0 0.0
    %210 = vmatpush2.msra.mxu0 0.0
    %211 = vmatprep.subr.mxu0 0.0
    %212 = vmatpush2.msra.mxu0 0.0
    %213 = vmatprep.subr.mxu0 0.0
    %214 = vmatpush2.msra.mxu0 0.0
    %215 = vmatprep.subr.mxu0 0.0
    %216 = vmatpush2.msra.mxu0 0.0
    %217 = vmatprep.subr.mxu0 0.0
    %218 = vmatpush2.msra.mxu0 0.0
    %219 = vmatprep.subr.mxu0 0.0
    %220 = vmatpush2.msra.mxu0 0.0
    %221 = vmatprep.subr.mxu0 0.0
    %222 = vmatpush2.msra.mxu0 0.0
    %223 = vmatprep.subr.mxu0 0.0
    %224 = vmatpush2.msra.mxu0 0.0
    %225 = vmatprep.subr.mxu0 0.0
    %226 = vmatpush2.msra.mxu0 0.0
    %227 = vmatprep.subr.mxu0 0.0
    %228 = vmatpush2.msra.mxu0 0.0
    %229 = vmatprep.subr.mxu0 0.0
    %230 = vmatpush2.msra.mxu0 0.0
    %231 = vmatprep.subr.mxu0 0.0
    %232 = vmatpush2.msra.mxu0 0.0
    %233 = vmatprep.subr.mxu0 0.0
    %234 = vmatpush2.msra.mxu0 0.0
    %235 = vmatprep.subr.mxu0 0.0
    %236 = vmatpush2.msra.mxu0 0.0
    %237 = vmatprep.mubr.f32.mxu0 0.0
    %238 = vmatmul.mubr.f32.gmra.mxu0 %v141
    %v239 = vpop.f32.mrf.mxu0
    %v240 = vadd.f32 0.0, %v239
    %v241 = vpop.f32.mrf.mxu0
    %242 = vmatprep.mubr.f32.mxu0 0.0
    %243 = vmatmul.mubr.f32.gmra.mxu0 %v142
    %v244 = vpop.f32.mrf.mxu0
    %v245 = vadd.f32 0.0, %v244
    %v246 = vpop.f32.mrf.mxu0
    %247 = vmatprep.mubr.f32.mxu0 0.0
    %248 = vmatmul.mubr.f32.gmra.mxu0 %v143
    %v249 = vpop.f32.mrf.mxu0
    %v250 = vadd.f32 0.0, %v249
    %v251 = vpop.f32.mrf.mxu0
    %252 = vmatprep.mubr.f32.mxu0 0.0
    %253 = vmatmul.mubr.f32.gmra.mxu0 %v144
    %v254 = vpop.f32.mrf.mxu0
    %v255 = vadd.f32 0.0, %v254
    %v256 = vpop.f32.mrf.mxu0
    %257 = vmatprep.mubr.f32.mxu0 0.0
    %258 = vmatmul.mubr.f32.gmra.mxu0 %v145
    %v259 = vpop.f32.mrf.mxu0
    %v260 = vadd.f32 0.0, %v259
    %v261 = vpop.f32.mrf.mxu0
    %262 = vmatprep.mubr.f32.mxu0 0.0
    %263 = vmatmul.mubr.f32.gmra.mxu0 %v146
    %v264 = vpop.f32.mrf.mxu0
    %v265 = vadd.f32 0.0, %v264
    %v266 = vpop.f32.mrf.mxu0
    %267 = vmatprep.mubr.f32.mxu0 0.0
    %268 = vmatmul.mubr.f32.gmra.mxu0 %v147
    %v269 = vpop.f32.mrf.mxu0
    %v270 = vadd.f32 0.0, %v269
    %v271 = vpop.f32.mrf.mxu0
    %272 = vmatprep.mubr.f32.mxu0 0.0
    %273 = vmatmul.mubr.f32.gmra.mxu0 %v148
    %v274 = vpop.f32.mrf.mxu0
    %v275 = vadd.f32 0.0, %v274
    %v276 = vpop.f32.mrf.mxu0
    %277 = vmatprep.mubr.f32.mxu0 0.0
    %278 = vmatmul.mubr.f32.gmra.mxu0 %v149
    %v279 = vpop.f32.mrf.mxu0
    %v280 = vadd.f32 0.0, %v279
    %v281 = vpop.f32.mrf.mxu0
    %282 = vmatprep.mubr.f32.mxu0 0.0
    %283 = vmatmul.mubr.f32.gmra.mxu0 %v150
    %v284 = vpop.f32.mrf.mxu0
    %v285 = vadd.f32 0.0, %v284
    %v286 = vpop.f32.mrf.mxu0
    %287 = vmatprep.mubr.f32.mxu0 0.0
    %288 = vmatmul.mubr.f32.gmra.mxu0 %v151
    %v289 = vpop.f32.mrf.mxu0
    %v290 = vadd.f32 0.0, %v289
    %v291 = vpop.f32.mrf.mxu0
    %292 = vmatprep.mubr.f32.mxu0 0.0
    %293 = vmatmul.mubr.f32.gmra.mxu0 %v152
    %v294 = vpop.f32.mrf.mxu0
    %v295 = vadd.f32 0.0, %v294
    %v296 = vpop.f32.mrf.mxu0
    %297 = vmatprep.mubr.f32.mxu0 0.0
    %298 = vmatmul.mubr.f32.gmra.mxu0 %v153
    %v299 = vpop.f32.mrf.mxu0
    %v300 = vadd.f32 0.0, %v299
    %v301 = vpop.f32.mrf.mxu0
    %302 = vmatprep.mubr.f32.mxu0 0.0
    %303 = vmatmul.mubr.f32.gmra.mxu0 %v154
    %v304 = vpop.f32.mrf.mxu0
    %v305 = vadd.f32 0.0, %v304
    %v306 = vpop.f32.mrf.mxu0
    %307 = vmatprep.mubr.f32.mxu0 0.0
    %308 = vmatmul.mubr.f32.gmra.mxu0 %v155
    %v309 = vpop.f32.mrf.mxu0
    %v310 = vadd.f32 0.0, %v309
    %v311 = vpop.f32.mrf.mxu0
    %312 = vmatprep.mubr.f32.mxu0 0.0
    %313 = vmatmul.mubr.f32.gmra.mxu0 %v156
    %v314 = vpop.f32.mrf.mxu0
    %v315 = vadd.f32 0.0, %v314
    %v316 = vpop.f32.mrf.mxu0
    %317 = vdwg.mxu0
    %318 = vmatprep.subr.mxu0 0.0
    %319 = vmatpush1.msra.mxu0 %v156
    %320 = vmatprep.subr.mxu0 0.0
    %321 = vmatpush1.msra.mxu0 %v155
    %322 = vmatprep.subr.mxu0 0.0
    %323 = vmatpush1.msra.mxu0 %v154
    %324 = vmatprep.subr.mxu0 0.0
    %325 = vmatpush1.msra.mxu0 %v153
    %326 = vmatprep.subr.mxu0 0.0
    %327 = vmatpush1.msra.mxu0 %v152
    %328 = vmatprep.subr.mxu0 0.0
    %329 = vmatpush1.msra.mxu0 %v151
    %330 = vmatprep.subr.mxu0 0.0
    %331 = vmatpush1.msra.mxu0 %v150
    %332 = vmatprep.subr.mxu0 0.0
    %333 = vmatpush1.msra.mxu0 %v149
    %334 = vmatprep.subr.mxu0 0.0
    %335 = vmatpush1.msra.mxu0 %v148
    %336 = vmatprep.subr.mxu0 0.0
    %337 = vmatpush1.msra.mxu0 %v147
    %338 = vmatprep.subr.mxu0 0.0
    %339 = vmatpush1.msra.mxu0 %v146
    %340 = vmatprep.subr.mxu0 0.0
    %341 = vmatpush1.msra.mxu0 %v145
    %342 = vmatprep.subr.mxu0 0.0
    %343 = vmatpush1.msra.mxu0 %v144
    %344 = vmatprep.subr.mxu0 0.0
    %345 = vmatpush1.msra.mxu0 %v143
    %346 = vmatprep.subr.mxu0 0.0
    %347 = vmatpush1.msra.mxu0 %v142
    %348 = vmatprep.subr.mxu0 0.0
    %349 = vmatpush1.msra.mxu0 %v141
    %350 = vmatprep.subr.mxu0 0.0
    %351 = vmatpush2.msra.mxu0 0.0
    %352 = vmatprep.subr.mxu0 0.0
    %353 = vmatpush2.msra.mxu0 0.0
    %354 = vmatprep.subr.mxu0 0.0
    %355 = vmatpush2.msra.mxu0 0.0
    %356 = vmatprep.subr.mxu0 0.0
    %357 = vmatpush2.msra.mxu0 0.0
    %358 = vmatprep.subr.mxu0 0.0
    %359 = vmatpush2.msra.mxu0 0.0
    %360 = vmatprep.subr.mxu0 0.0
    %361 = vmatpush2.msra.mxu0 0.0
    %362 = vmatprep.subr.mxu0 0.0
    %363 = vmatpush2.msra.mxu0 0.0
    %364 = vmatprep.subr.mxu0 0.0
    %365 = vmatpush2.msra.mxu0 0.0
    %366 = vmatprep.subr.mxu0 0.0
    %367 = vmatpush2.msra.mxu0 0.0
    %368 = vmatprep.subr.mxu0 0.0
    %369 = vmatpush2.msra.mxu0 0.0
    %370 = vmatprep.subr.mxu0 0.0
    %371 = vmatpush2.msra.mxu0 0.0
    %372 = vmatprep.subr.mxu0 0.0
    %373 = vmatpush2.msra.mxu0 0.0
    %374 = vmatprep.subr.mxu0 0.0
    %375 = vmatpush2.msra.mxu0 0.0
    %376 = vmatprep.subr.mxu0 0.0
    %377 = vmatpush2.msra.mxu0 0.0
    %378 = vmatprep.subr.mxu0 0.0
    %379 = vmatpush2.msra.mxu0 0.0
    %380 = vmatprep.subr.mxu0 0.0
    %381 = vmatpush2.msra.mxu0 0.0
    %382 = vmatprep.mubr.f32.mxu0 0.0
    %383 = vmatmul.mubr.f32.gmra.mxu0 %v240
    %v384 = vpop.f32.mrf.mxu0
    %v385 = vadd.f32 0.0, %v384
    %v386 = vpop.f32.mrf.mxu0
    %387 = vmatprep.mubr.f32.mxu0 0.0
    %388 = vmatmul.mubr.f32.gmra.mxu0 %v245
    %v389 = vpop.f32.mrf.mxu0
    %v390 = vadd.f32 0.0, %v389
    %v391 = vpop.f32.mrf.mxu0
    %392 = vmatprep.mubr.f32.mxu0 0.0
    %393 = vmatmul.mubr.f32.gmra.mxu0 %v250
    %v394 = vpop.f32.mrf.mxu0
    %v395 = vadd.f32 0.0, %v394
    %v396 = vpop.f32.mrf.mxu0
    %397 = vmatprep.mubr.f32.mxu0 0.0
    %398 = vmatmul.mubr.f32.gmra.mxu0 %v255
    %v399 = vpop.f32.mrf.mxu0
    %v400 = vadd.f32 0.0, %v399
    %v401 = vpop.f32.mrf.mxu0
    %402 = vmatprep.mubr.f32.mxu0 0.0
    %403 = vmatmul.mubr.f32.gmra.mxu0 %v260
    %v404 = vpop.f32.mrf.mxu0
    %v405 = vadd.f32 0.0, %v404
    %v406 = vpop.f32.mrf.mxu0
    %407 = vmatprep.mubr.f32.mxu0 0.0
    %408 = vmatmul.mubr.f32.gmra.mxu0 %v265
    %v409 = vpop.f32.mrf.mxu0
    %v410 = vadd.f32 0.0, %v409
    %v411 = vpop.f32.mrf.mxu0
    %412 = vmatprep.mubr.f32.mxu0 0.0
    %413 = vmatmul.mubr.f32.gmra.mxu0 %v270
    %v414 = vpop.f32.mrf.mxu0
    %v415 = vadd.f32 0.0, %v414
    %v416 = vpop.f32.mrf.mxu0
    %417 = vmatprep.mubr.f32.mxu0 0.0
    %418 = vmatmul.mubr.f32.gmra.mxu0 %v275
    %v419 = vpop.f32.mrf.mxu0
    %v420 = vadd.f32 0.0, %v419
    %v421 = vpop.f32.mrf.mxu0
    %422 = vmatprep.mubr.f32.mxu0 0.0
    %423 = vmatmul.mubr.f32.gmra.mxu0 %v280
    %v424 = vpop.f32.mrf.mxu0
    %v425 = vadd.f32 0.0, %v424
    %v426 = vpop.f32.mrf.mxu0
    %427 = vmatprep.mubr.f32.mxu0 0.0
    %428 = vmatmul.mubr.f32.gmra.mxu0 %v285
    %v429 = vpop.f32.mrf.mxu0
    %v430 = vadd.f32 0.0, %v429
    %v431 = vpop.f32.mrf.mxu0
    %432 = vmatprep.mubr.f32.mxu0 0.0
    %433 = vmatmul.mubr.f32.gmra.mxu0 %v290
    %v434 = vpop.f32.mrf.mxu0
    %v435 = vadd.f32 0.0, %v434
    %v436 = vpop.f32.mrf.mxu0
    %437 = vmatprep.mubr.f32.mxu0 0.0
    %438 = vmatmul.mubr.f32.gmra.mxu0 %v295
    %v439 = vpop.f32.mrf.mxu0
    %v440 = vadd.f32 0.0, %v439
    %v441 = vpop.f32.mrf.mxu0
    %442 = vmatprep.mubr.f32.mxu0 0.0
    %443 = vmatmul.mubr.f32.gmra.mxu0 %v300
    %v444 = vpop.f32.mrf.mxu0
    %v445 = vadd.f32 0.0, %v444
    %v446 = vpop.f32.mrf.mxu0
    %447 = vmatprep.mubr.f32.mxu0 0.0
    %448 = vmatmul.mubr.f32.gmra.mxu0 %v305
    %v449 = vpop.f32.mrf.mxu0
    %v450 = vadd.f32 0.0, %v449
    %v451 = vpop.f32.mrf.mxu0
    %452 = vmatprep.mubr.f32.mxu0 0.0
    %453 = vmatmul.mubr.f32.gmra.mxu0 %v310
    %v454 = vpop.f32.mrf.mxu0
    %v455 = vadd.f32 0.0, %v454
    %v456 = vpop.f32.mrf.mxu0
    %457 = vmatprep.mubr.f32.mxu0 0.0
    %458 = vmatmul.mubr.f32.gmra.mxu0 %v315
    %v459 = vpop.f32.mrf.mxu0
    %v460 = vadd.f32 0.0, %v459
    %v461 = vpop.f32.mrf.mxu0
    %462 = vdwg.mxu0
    %v463 = vadd.f32 %v157, %v141
    %v464 = vadd.f32 %v158, %v142
    %v465 = vadd.f32 %v159, %v143
    %v466 = vadd.f32 %v160, %v144
    %v467 = vadd.f32 %v161, %v145
    %v468 = vadd.f32 %v162, %v146
    %v469 = vadd.f32 %v163, %v147
    %v470 = vadd.f32 %v164, %v148
    %v471 = vadd.f32 %v165, %v149
    %v472 = vadd.f32 %v166, %v150
    %v473 = vadd.f32 %v167, %v151
    %v474 = vadd.f32 %v168, %v152
    %v475 = vadd.f32 %v169, %v153
    %v476 = vadd.f32 %v170, %v154
    %v477 = vadd.f32 %v171, %v155
    %v478 = vadd.f32 %v172, %v156
    %v479 = vmul.f32 %v240, 0.5
    %v480 = vmul.f32 %v245, 0.5
    %v481 = vmul.f32 %v250, 0.5
    %v482 = vmul.f32 %v255, 0.5
    %v483 = vmul.f32 %v260, 0.5
    %v484 = vmul.f32 %v265, 0.5
    %v485 = vmul.f32 %v270, 0.5
    %v486 = vmul.f32 %v275, 0.5
    %v487 = vmul.f32 %v280, 0.5
    %v488 = vmul.f32 %v285, 0.5
    %v489 = vmul.f32 %v290, 0.5
    %v490 = vmul.f32 %v295, 0.5
    %v491 = vmul.f32 %v300, 0.5
    %v492 = vmul.f32 %v305, 0.5
    %v493 = vmul.f32 %v310, 0.5
    %v494 = vmul.f32 %v315, 0.5
    %v495 = vadd.f32 %v463, %v479
    %v496 = vadd.f32 %v464, %v480
    %v497 = vadd.f32 %v465, %v481
    %v498 = vadd.f32 %v466, %v482
    %v499 = vadd.f32 %v467, %v483
    %v500 = vadd.f32 %v468, %v484
    %v501 = vadd.f32 %v469, %v485
    %v502 = vadd.f32 %v470, %v486
    %v503 = vadd.f32 %v471, %v487
    %v504 = vadd.f32 %v472, %v488
    %v505 = vadd.f32 %v473, %v489
    %v506 = vadd.f32 %v474, %v490
    %v507 = vadd.f32 %v475, %v491
    %v508 = vadd.f32 %v476, %v492
    %v509 = vadd.f32 %v477, %v493
    %v510 = vadd.f32 %v478, %v494
    %v511 = vmul.f32 %v157, 0.16666667
    %v512 = vmul.f32 %v158, 0.16666667
    %v513 = vmul.f32 %v159, 0.16666667
    %v514 = vmul.f32 %v160, 0.16666667
    %v515 = vmul.f32 %v161, 0.16666667
    %v516 = vmul.f32 %v162, 0.16666667
    %v517 = vmul.f32 %v163, 0.16666667
    %v518 = vmul.f32 %v164, 0.16666667
    %v519 = vmul.f32 %v165, 0.16666667
    %v520 = vmul.f32 %v166, 0.16666667
    %v521 = vmul.f32 %v167, 0.16666667
    %v522 = vmul.f32 %v168, 0.16666667
    %v523 = vmul.f32 %v169, 0.16666667
    %v524 = vmul.f32 %v170, 0.16666667
    %v525 = vmul.f32 %v171, 0.16666667
    %v526 = vmul.f32 %v172, 0.16666667
    %v527 = vmul.f32 %v141, 0.041666668
    %v528 = vmul.f32 %v142, 0.041666668
    %v529 = vmul.f32 %v143, 0.041666668
    %v530 = vmul.f32 %v144, 0.041666668
    %v531 = vmul.f32 %v145, 0.041666668
    %v532 = vmul.f32 %v146, 0.041666668
    %v533 = vmul.f32 %v147, 0.041666668
    %v534 = vmul.f32 %v148, 0.041666668
    %v535 = vmul.f32 %v149, 0.041666668
    %v536 = vmul.f32 %v150, 0.041666668
    %v537 = vmul.f32 %v151, 0.041666668
    %v538 = vmul.f32 %v152, 0.041666668
    %v539 = vmul.f32 %v153, 0.041666668
    %v540 = vmul.f32 %v154, 0.041666668
    %v541 = vmul.f32 %v155, 0.041666668
    %v542 = vmul.f32 %v156, 0.041666668
    %v543 = vadd.f32 %v511, %v527
    %v544 = vadd.f32 %v512, %v528
    %v545 = vadd.f32 %v513, %v529
    %v546 = vadd.f32 %v514, %v530
    %v547 = vadd.f32 %v515, %v531
    %v548 = vadd.f32 %v516, %v532
    %v549 = vadd.f32 %v517, %v533
    %v550 = vadd.f32 %v518, %v534
    %v551 = vadd.f32 %v519, %v535
    %v552 = vadd.f32 %v520, %v536
    %v553 = vadd.f32 %v521, %v537
    %v554 = vadd.f32 %v522, %v538
    %v555 = vadd.f32 %v523, %v539
    %v556 = vadd.f32 %v524, %v540
    %v557 = vadd.f32 %v525, %v541
    %v558 = vadd.f32 %v526, %v542
    %v559 = vmul.f32 %v240, 0.008333334
    %v560 = vmul.f32 %v245, 0.008333334
    %v561 = vmul.f32 %v250, 0.008333334
    %v562 = vmul.f32 %v255, 0.008333334
    %v563 = vmul.f32 %v260, 0.008333334
    %v564 = vmul.f32 %v265, 0.008333334
    %v565 = vmul.f32 %v270, 0.008333334
    %v566 = vmul.f32 %v275, 0.008333334
    %v567 = vmul.f32 %v280, 0.008333334
    %v568 = vmul.f32 %v285, 0.008333334
    %v569 = vmul.f32 %v290, 0.008333334
    %v570 = vmul.f32 %v295, 0.008333334
    %v571 = vmul.f32 %v300, 0.008333334
    %v572 = vmul.f32 %v305, 0.008333334
    %v573 = vmul.f32 %v310, 0.008333334
    %v574 = vmul.f32 %v315, 0.008333334
    %v575 = vadd.f32 %v543, %v559
    %v576 = vadd.f32 %v544, %v560
    %v577 = vadd.f32 %v545, %v561
    %v578 = vadd.f32 %v546, %v562
    %v579 = vadd.f32 %v547, %v563
    %v580 = vadd.f32 %v548, %v564
    %v581 = vadd.f32 %v549, %v565
    %v582 = vadd.f32 %v550, %v566
    %v583 = vadd.f32 %v551, %v567
    %v584 = vadd.f32 %v552, %v568
    %v585 = vadd.f32 %v553, %v569
    %v586 = vadd.f32 %v554, %v570
    %v587 = vadd.f32 %v555, %v571
    %v588 = vadd.f32 %v556, %v572
    %v589 = vadd.f32 %v557, %v573
    %v590 = vadd.f32 %v558, %v574
    %v591 = vmul.f32 %v157, 0.0013888889
    %v592 = vmul.f32 %v158, 0.0013888889
    %v593 = vmul.f32 %v159, 0.0013888889
    %v594 = vmul.f32 %v160, 0.0013888889
    %v595 = vmul.f32 %v161, 0.0013888889
    %v596 = vmul.f32 %v162, 0.0013888889
    %v597 = vmul.f32 %v163, 0.0013888889
    %v598 = vmul.f32 %v164, 0.0013888889
    %v599 = vmul.f32 %v165, 0.0013888889
    %v600 = vmul.f32 %v166, 0.0013888889
    %v601 = vmul.f32 %v167, 0.0013888889
    %v602 = vmul.f32 %v168, 0.0013888889
    %v603 = vmul.f32 %v169, 0.0013888889
    %v604 = vmul.f32 %v170, 0.0013888889
    %v605 = vmul.f32 %v171, 0.0013888889
    %v606 = vmul.f32 %v172, 0.0013888889
    %v607 = vmul.f32 %v141, 0.0001984127
    %v608 = vmul.f32 %v142, 0.0001984127
    %v609 = vmul.f32 %v143, 0.0001984127
    %v610 = vmul.f32 %v144, 0.0001984127
    %v611 = vmul.f32 %v145, 0.0001984127
    %v612 = vmul.f32 %v146, 0.0001984127
    %v613 = vmul.f32 %v147, 0.0001984127
    %v614 = vmul.f32 %v148, 0.0001984127
    %v615 = vmul.f32 %v149, 0.0001984127
    %v616 = vmul.f32 %v150, 0.0001984127
    %v617 = vmul.f32 %v151, 0.0001984127
    %v618 = vmul.f32 %v152, 0.0001984127
    %v619 = vmul.f32 %v153, 0.0001984127
    %v620 = vmul.f32 %v154, 0.0001984127
    %v621 = vmul.f32 %v155, 0.0001984127
    %v622 = vmul.f32 %v156, 0.0001984127
    %v623 = vadd.f32 %v591, %v607
    %v624 = vadd.f32 %v592, %v608
    %v625 = vadd.f32 %v593, %v609
    %v626 = vadd.f32 %v594, %v610
    %v627 = vadd.f32 %v595, %v611
    %v628 = vadd.f32 %v596, %v612
    %v629 = vadd.f32 %v597, %v613
    %v630 = vadd.f32 %v598, %v614
    %v631 = vadd.f32 %v599, %v615
    %v632 = vadd.f32 %v600, %v616
    %v633 = vadd.f32 %v601, %v617
    %v634 = vadd.f32 %v602, %v618
    %v635 = vadd.f32 %v603, %v619
    %v636 = vadd.f32 %v604, %v620
    %v637 = vadd.f32 %v605, %v621
    %v638 = vadd.f32 %v606, %v622
    %v639 = vmul.f32 %v240, 2.4801588e-05
    %v640 = vmul.f32 %v245, 2.4801588e-05
    %v641 = vmul.f32 %v250, 2.4801588e-05
    %v642 = vmul.f32 %v255, 2.4801588e-05
    %v643 = vmul.f32 %v260, 2.4801588e-05
    %v644 = vmul.f32 %v265, 2.4801588e-05
    %v645 = vmul.f32 %v270, 2.4801588e-05
    %v646 = vmul.f32 %v275, 2.4801588e-05
    %v647 = vmul.f32 %v280, 2.4801588e-05
    %v648 = vmul.f32 %v285, 2.4801588e-05
    %v649 = vmul.f32 %v290, 2.4801588e-05
    %v650 = vmul.f32 %v295, 2.4801588e-05
    %v651 = vmul.f32 %v300, 2.4801588e-05
    %v652 = vmul.f32 %v305, 2.4801588e-05
    %v653 = vmul.f32 %v310, 2.4801588e-05
    %v654 = vmul.f32 %v315, 2.4801588e-05
    %v655 = vadd.f32 %v623, %v639
    %v656 = vadd.f32 %v624, %v640
    %v657 = vadd.f32 %v625, %v641
    %v658 = vadd.f32 %v626, %v642
    %v659 = vadd.f32 %v627, %v643
    %v660 = vadd.f32 %v628, %v644
    %v661 = vadd.f32 %v629, %v645
    %v662 = vadd.f32 %v630, %v646
    %v663 = vadd.f32 %v631, %v647
    %v664 = vadd.f32 %v632, %v648
    %v665 = vadd.f32 %v633, %v649
    %v666 = vadd.f32 %v634, %v650
    %v667 = vadd.f32 %v635, %v651
    %v668 = vadd.f32 %v636, %v652
    %v669 = vadd.f32 %v637, %v653
    %v670 = vadd.f32 %v638, %v654
    %671 = vmatprep.subr.mxu0 0.0
    %672 = vmatpush1.msra.mxu0 %v670
    %673 = vmatprep.subr.mxu0 0.0
    %674 = vmatpush1.msra.mxu0 %v669
    %675 = vmatprep.subr.mxu0 0.0
    %676 = vmatpush1.msra.mxu0 %v668
    %677 = vmatprep.subr.mxu0 0.0
    %678 = vmatpush1.msra.mxu0 %v667
    %679 = vmatprep.subr.mxu0 0.0
    %680 = vmatpush1.msra.mxu0 %v666
    %681 = vmatprep.subr.mxu0 0.0
    %682 = vmatpush1.msra.mxu0 %v665
    %683 = vmatprep.subr.mxu0 0.0
    %684 = vmatpush1.msra.mxu0 %v664
    %685 = vmatprep.subr.mxu0 0.0
    %686 = vmatpush1.msra.mxu0 %v663
    %687 = vmatprep.subr.mxu0 0.0
    %688 = vmatpush1.msra.mxu0 %v662
    %689 = vmatprep.subr.mxu0 0.0
    %690 = vmatpush1.msra.mxu0 %v661
    %691 = vmatprep.subr.mxu0 0.0
    %692 = vmatpush1.msra.mxu0 %v660
    %693 = vmatprep.subr.mxu0 0.0
    %694 = vmatpush1.msra.mxu0 %v659
    %695 = vmatprep.subr.mxu0 0.0
    %696 = vmatpush1.msra.mxu0 %v658
    %697 = vmatprep.subr.mxu0 0.0
    %698 = vmatpush1.msra.mxu0 %v657
    %699 = vmatprep.subr.mxu0 0.0
    %700 = vmatpush1.msra.mxu0 %v656
    %701 = vmatprep.subr.mxu0 0.0
    %702 = vmatpush1.msra.mxu0 %v655
    %703 = vmatprep.subr.mxu0 0.0
    %704 = vmatpush2.msra.mxu0 0.0
    %705 = vmatprep.subr.mxu0 0.0
    %706 = vmatpush2.msra.mxu0 0.0
    %707 = vmatprep.subr.mxu0 0.0
    %708 = vmatpush2.msra.mxu0 0.0
    %709 = vmatprep.subr.mxu0 0.0
    %710 = vmatpush2.msra.mxu0 0.0
    %711 = vmatprep.subr.mxu0 0.0
    %712 = vmatpush2.msra.mxu0 0.0
    %713 = vmatprep.subr.mxu0 0.0
    %714 = vmatpush2.msra.mxu0 0.0
    %715 = vmatprep.subr.mxu0 0.0
    %716 = vmatpush2.msra.mxu0 0.0
    %717 = vmatprep.subr.mxu0 0.0
    %718 = vmatpush2.msra.mxu0 0.0
    %719 = vmatprep.subr.mxu0 0.0
    %720 = vmatpush2.msra.mxu0 0.0
    %721 = vmatprep.subr.mxu0 0.0
    %722 = vmatpush2.msra.mxu0 0.0
    %723 = vmatprep.subr.mxu0 0.0
    %724 = vmatpush2.msra.mxu0 0.0
    %725 = vmatprep.subr.mxu0 0.0
    %726 = vmatpush2.msra.mxu0 0.0
    %727 = vmatprep.subr.mxu0 0.0
    %728 = vmatpush2.msra.mxu0 0.0
    %729 = vmatprep.subr.mxu0 0.0
    %730 = vmatpush2.msra.mxu0 0.0
    %731 = vmatprep.subr.mxu0 0.0
    %732 = vmatpush2.msra.mxu0 0.0
    %733 = vmatprep.subr.mxu0 0.0
    %734 = vmatpush2.msra.mxu0 0.0
    %735 = vmatprep.mubr.f32.mxu0 0.0
    %736 = vmatmul.mubr.f32.gmra.mxu0 %v385
    %v737 = vpop.f32.mrf.mxu0
    %v738 = vadd.f32 0.0, %v737
    %v739 = vpop.f32.mrf.mxu0
    %740 = vmatprep.mubr.f32.mxu0 0.0
    %741 = vmatmul.mubr.f32.gmra.mxu0 %v390
    %v742 = vpop.f32.mrf.mxu0
    %v743 = vadd.f32 0.0, %v742
    %v744 = vpop.f32.mrf.mxu0
    %745 = vmatprep.mubr.f32.mxu0 0.0
    %746 = vmatmul.mubr.f32.gmra.mxu0 %v395
    %v747 = vpop.f32.mrf.mxu0
    %v748 = vadd.f32 0.0, %v747
    %v749 = vpop.f32.mrf.mxu0
    %750 = vmatprep.mubr.f32.mxu0 0.0
    %751 = vmatmul.mubr.f32.gmra.mxu0 %v400
    %v752 = vpop.f32.mrf.mxu0
    %v753 = vadd.f32 0.0, %v752
    %v754 = vpop.f32.mrf.mxu0
    %755 = vmatprep.mubr.f32.mxu0 0.0
    %756 = vmatmul.mubr.f32.gmra.mxu0 %v405
    %v757 = vpop.f32.mrf.mxu0
    %v758 = vadd.f32 0.0, %v757
    %v759 = vpop.f32.mrf.mxu0
    %760 = vmatprep.mubr.f32.mxu0 0.0
    %761 = vmatmul.mubr.f32.gmra.mxu0 %v410
    %v762 = vpop.f32.mrf.mxu0
    %v763 = vadd.f32 0.0, %v762
    %v764 = vpop.f32.mrf.mxu0
    %765 = vmatprep.mubr.f32.mxu0 0.0
    %766 = vmatmul.mubr.f32.gmra.mxu0 %v415
    %v767 = vpop.f32.mrf.mxu0
    %v768 = vadd.f32 0.0, %v767
    %v769 = vpop.f32.mrf.mxu0
    %770 = vmatprep.mubr.f32.mxu0 0.0
    %771 = vmatmul.mubr.f32.gmra.mxu0 %v420
    %v772 = vpop.f32.mrf.mxu0
    %v773 = vadd.f32 0.0, %v772
    %v774 = vpop.f32.mrf.mxu0
    %775 = vmatprep.mubr.f32.mxu0 0.0
    %776 = vmatmul.mubr.f32.gmra.mxu0 %v425
    %v777 = vpop.f32.mrf.mxu0
    %v778 = vadd.f32 0.0, %v777
    %v779 = vpop.f32.mrf.mxu0
    %780 = vmatprep.mubr.f32.mxu0 0.0
    %781 = vmatmul.mubr.f32.gmra.mxu0 %v430
    %v782 = vpop.f32.mrf.mxu0
    %v783 = vadd.f32 0.0, %v782
    %v784 = vpop.f32.mrf.mxu0
    %785 = vmatprep.mubr.f32.mxu0 0.0
    %786 = vmatmul.mubr.f32.gmra.mxu0 %v435
    %v787 = vpop.f32.mrf.mxu0
    %v788 = vadd.f32 0.0, %v787
    %v789 = vpop.f32.mrf.mxu0
    %790 = vmatprep.mubr.f32.mxu0 0.0
    %791 = vmatmul.mubr.f32.gmra.mxu0 %v440
    %v792 = vpop.f32.mrf.mxu0
    %v793 = vadd.f32 0.0, %v792
    %v794 = vpop.f32.mrf.mxu0
    %795 = vmatprep.mubr.f32.mxu0 0.0
    %796 = vmatmul.mubr.f32.gmra.mxu0 %v445
    %v797 = vpop.f32.mrf.mxu0
    %v798 = vadd.f32 0.0, %v797
    %v799 = vpop.f32.mrf.mxu0
    %800 = vmatprep.mubr.f32.mxu0 0.0
    %801 = vmatmul.mubr.f32.gmra.mxu0 %v450
    %v802 = vpop.f32.mrf.mxu0
    %v803 = vadd.f32 0.0, %v802
    %v804 = vpop.f32.mrf.mxu0
    %805 = vmatprep.mubr.f32.mxu0 0.0
    %806 = vmatmul.mubr.f32.gmra.mxu0 %v455
    %v807 = vpop.f32.mrf.mxu0
    %v808 = vadd.f32 0.0, %v807
    %v809 = vpop.f32.mrf.mxu0
    %810 = vmatprep.mubr.f32.mxu0 0.0
    %811 = vmatmul.mubr.f32.gmra.mxu0 %v460
    %v812 = vpop.f32.mrf.mxu0
    %v813 = vadd.f32 0.0, %v812
    %v814 = vpop.f32.mrf.mxu0
    %815 = vdwg.mxu0
    %v816 = vadd.f32 %v575, %v738
    %v817 = vadd.f32 %v576, %v743
    %v818 = vadd.f32 %v577, %v748
    %v819 = vadd.f32 %v578, %v753
    %v820 = vadd.f32 %v579, %v758
    %v821 = vadd.f32 %v580, %v763
    %v822 = vadd.f32 %v581, %v768
    %v823 = vadd.f32 %v582, %v773
    %v824 = vadd.f32 %v583, %v778
    %v825 = vadd.f32 %v584, %v783
    %v826 = vadd.f32 %v585, %v788
    %v827 = vadd.f32 %v586, %v793
    %v828 = vadd.f32 %v587, %v798
    %v829 = vadd.f32 %v588, %v803
    %v830 = vadd.f32 %v589, %v808
    %v831 = vadd.f32 %v590, %v813
    %832 = vmatprep.subr.mxu0 0.0
    %833 = vmatpush1.msra.mxu0 %v831
    %834 = vmatprep.subr.mxu0 0.0
    %835 = vmatpush1.msra.mxu0 %v830
    %836 = vmatprep.subr.mxu0 0.0
    %837 = vmatpush1.msra.mxu0 %v829
    %838 = vmatprep.subr.mxu0 0.0
    %839 = vmatpush1.msra.mxu0 %v828
    %840 = vmatprep.subr.mxu0 0.0
    %841 = vmatpush1.msra.mxu0 %v827
    %842 = vmatprep.subr.mxu0 0.0
    %843 = vmatpush1.msra.mxu0 %v826
    %844 = vmatprep.subr.mxu0 0.0
    %845 = vmatpush1.msra.mxu0 %v825
    %846 = vmatprep.subr.mxu0 0.0
    %847 = vmatpush1.msra.mxu0 %v824
    %848 = vmatprep.subr.mxu0 0.0
    %849 = vmatpush1.msra.mxu0 %v823
    %850 = vmatprep.subr.mxu0 0.0
    %851 = vmatpush1.msra.mxu0 %v822
    %852 = vmatprep.subr.mxu0 0.0
    %853 = vmatpush1.msra.mxu0 %v821
    %854 = vmatprep.subr.mxu0 0.0
    %855 = vmatpush1.msra.mxu0 %v820
    %856 = vmatprep.subr.mxu0 0.0
    %857 = vmatpush1.msra.mxu0 %v819
    %858 = vmatprep.subr.mxu0 0.0
    %859 = vmatpush1.msra.mxu0 %v818
    %860 = vmatprep.subr.mxu0 0.0
    %861 = vmatpush1.msra.mxu0 %v817
    %862 = vmatprep.subr.mxu0 0.0
    %863 = vmatpush1.msra.mxu0 %v816
    %864 = vmatprep.subr.mxu0 0.0
    %865 = vmatpush2.msra.mxu0 0.0
    %866 = vmatprep.subr.mxu0 0.0
    %867 = vmatpush2.msra.mxu0 0.0
    %868 = vmatprep.subr.mxu0 0.0
    %869 = vmatpush2.msra.mxu0 0.0
    %870 = vmatprep.subr.mxu0 0.0
    %871 = vmatpush2.msra.mxu0 0.0
    %872 = vmatprep.subr.mxu0 0.0
    %873 = vmatpush2.msra.mxu0 0.0
    %874 = vmatprep.subr.mxu0 0.0
    %875 = vmatpush2.msra.mxu0 0.0
    %876 = vmatprep.subr.mxu0 0.0
    %877 = vmatpush2.msra.mxu0 0.0
    %878 = vmatprep.subr.mxu0 0.0
    %879 = vmatpush2.msra.mxu0 0.0
    %880 = vmatprep.subr.mxu0 0.0
    %881 = vmatpush2.msra.mxu0 0.0
    %882 = vmatprep.subr.mxu0 0.0
    %883 = vmatpush2.msra.mxu0 0.0
    %884 = vmatprep.subr.mxu0 0.0
    %885 = vmatpush2.msra.mxu0 0.0
    %886 = vmatprep.subr.mxu0 0.0
    %887 = vmatpush2.msra.mxu0 0.0
    %888 = vmatprep.subr.mxu0 0.0
    %889 = vmatpush2.msra.mxu0 0.0
    %890 = vmatprep.subr.mxu0 0.0
    %891 = vmatpush2.msra.mxu0 0.0
    %892 = vmatprep.subr.mxu0 0.0
    %893 = vmatpush2.msra.mxu0 0.0
    %894 = vmatprep.subr.mxu0 0.0
    %895 = vmatpush2.msra.mxu0 0.0
    %896 = vmatprep.mubr.f32.mxu0 0.0
    %897 = vmatmul.mubr.f32.gmra.mxu0 %v385
    %v898 = vpop.f32.mrf.mxu0
    %v899 = vadd.f32 0.0, %v898
    %v900 = vpop.f32.mrf.mxu0
    %901 = vmatprep.mubr.f32.mxu0 0.0
    %902 = vmatmul.mubr.f32.gmra.mxu0 %v390
    %v903 = vpop.f32.mrf.mxu0
    %v904 = vadd.f32 0.0, %v903
    %v905 = vpop.f32.mrf.mxu0
    %906 = vmatprep.mubr.f32.mxu0 0.0
    %907 = vmatmul.mubr.f32.gmra.mxu0 %v395
    %v908 = vpop.f32.mrf.mxu0
    %v909 = vadd.f32 0.0, %v908
    %v910 = vpop.f32.mrf.mxu0
    %911 = vmatprep.mubr.f32.mxu0 0.0
    %912 = vmatmul.mubr.f32.gmra.mxu0 %v400
    %v913 = vpop.f32.mrf.mxu0
    %v914 = vadd.f32 0.0, %v913
    %v915 = vpop.f32.mrf.mxu0
    %916 = vmatprep.mubr.f32.mxu0 0.0
    %917 = vmatmul.mubr.f32.gmra.mxu0 %v405
    %v918 = vpop.f32.mrf.mxu0
    %v919 = vadd.f32 0.0, %v918
    %v920 = vpop.f32.mrf.mxu0
    %921 = vmatprep.mubr.f32.mxu0 0.0
    %922 = vmatmul.mubr.f32.gmra.mxu0 %v410
    %v923 = vpop.f32.mrf.mxu0
    %v924 = vadd.f32 0.0, %v923
    %v925 = vpop.f32.mrf.mxu0
    %926 = vmatprep.mubr.f32.mxu0 0.0
    %927 = vmatmul.mubr.f32.gmra.mxu0 %v415
    %v928 = vpop.f32.mrf.mxu0
    %v929 = vadd.f32 0.0, %v928
    %v930 = vpop.f32.mrf.mxu0
    %931 = vmatprep.mubr.f32.mxu0 0.0
    %932 = vmatmul.mubr.f32.gmra.mxu0 %v420
    %v933 = vpop.f32.mrf.mxu0
    %v934 = vadd.f32 0.0, %v933
    %v935 = vpop.f32.mrf.mxu0
    %936 = vmatprep.mubr.f32.mxu0 0.0
    %937 = vmatmul.mubr.f32.gmra.mxu0 %v425
    %v938 = vpop.f32.mrf.mxu0
    %v939 = vadd.f32 0.0, %v938
    %v940 = vpop.f32.mrf.mxu0
    %941 = vmatprep.mubr.f32.mxu0 0.0
    %942 = vmatmul.mubr.f32.gmra.mxu0 %v430
    %v943 = vpop.f32.mrf.mxu0
    %v944 = vadd.f32 0.0, %v943
    %v945 = vpop.f32.mrf.mxu0
    %946 = vmatprep.mubr.f32.mxu0 0.0
    %947 = vmatmul.mubr.f32.gmra.mxu0 %v435
    %v948 = vpop.f32.mrf.mxu0
    %v949 = vadd.f32 0.0, %v948
    %v950 = vpop.f32.mrf.mxu0
    %951 = vmatprep.mubr.f32.mxu0 0.0
    %952 = vmatmul.mubr.f32.gmra.mxu0 %v440
    %v953 = vpop.f32.mrf.mxu0
    %v954 = vadd.f32 0.0, %v953
    %v955 = vpop.f32.mrf.mxu0
    %956 = vmatprep.mubr.f32.mxu0 0.0
    %957 = vmatmul.mubr.f32.gmra.mxu0 %v445
    %v958 = vpop.f32.mrf.mxu0
    %v959 = vadd.f32 0.0, %v958
    %v960 = vpop.f32.mrf.mxu0
    %961 = vmatprep.mubr.f32.mxu0 0.0
    %962 = vmatmul.mubr.f32.gmra.mxu0 %v450
    %v963 = vpop.f32.mrf.mxu0
    %v964 = vadd.f32 0.0, %v963
    %v965 = vpop.f32.mrf.mxu0
    %966 = vmatprep.mubr.f32.mxu0 0.0
    %967 = vmatmul.mubr.f32.gmra.mxu0 %v455
    %v968 = vpop.f32.mrf.mxu0
    %v969 = vadd.f32 0.0, %v968
    %v970 = vpop.f32.mrf.mxu0
    %971 = vmatprep.mubr.f32.mxu0 0.0
    %972 = vmatmul.mubr.f32.gmra.mxu0 %v460
    %v973 = vpop.f32.mrf.mxu0
    %v974 = vadd.f32 0.0, %v973
    %v975 = vpop.f32.mrf.mxu0
    %976 = vdwg.mxu0
    %v977 = vadd.f32 %v495, %v899
    %v978 = vadd.f32 %v496, %v904
    %v979 = vadd.f32 %v497, %v909
    %v980 = vadd.f32 %v498, %v914
    %v981 = vadd.f32 %v499, %v919
    %v982 = vadd.f32 %v500, %v924
    %v983 = vadd.f32 %v501, %v929
    %v984 = vadd.f32 %v502, %v934
    %v985 = vadd.f32 %v503, %v939
    %v986 = vadd.f32 %v504, %v944
    %v987 = vadd.f32 %v505, %v949
    %v988 = vadd.f32 %v506, %v954
    %v989 = vadd.f32 %v507, %v959
    %v990 = vadd.f32 %v508, %v964
    %v991 = vadd.f32 %v509, %v969
    %v992 = vadd.f32 %v510, %v974
    %993 = vrot.lane.b32.xlu0 %v979, 112
    %v994 = vpop.permute.xlu0 %993
    %995 = vrot.lane.b32.xlu0 %v980, 112
    %v996 = vpop.permute.xlu0 %995
    %997 = vrot.lane.b32.xlu0 %v981, 112
    %v998 = vpop.permute.xlu0 %997
    %999 = vrot.lane.b32.xlu0 %v982, 112
    %v1000 = vpop.permute.xlu0 %999
    %1001 = vrot.lane.b32.xlu0 %v983, 112
    %v1002 = vpop.permute.xlu0 %1001
    %1003 = vrot.lane.b32.xlu0 %v984, 112
    %v1004 = vpop.permute.xlu0 %1003
    %1005 = vrot.lane.b32.xlu0 %v985, 112
    %v1006 = vpop.permute.xlu0 %1005
    %1007 = vrot.lane.b32.xlu0 %v986, 112
    %v1008 = vpop.permute.xlu0 %1007
    %1009 = vrot.lane.b32.xlu0 %v987, 112
    %v1010 = vpop.permute.xlu0 %1009
    %1011 = vrot.lane.b32.xlu0 %v988, 112
    %v1012 = vpop.permute.xlu0 %1011
    %1013 = vrot.lane.b32.xlu0 %v989, 112
    %v1014 = vpop.permute.xlu0 %1013
    %1015 = vrot.lane.b32.xlu0 %v990, 112
    %v1016 = vpop.permute.xlu0 %1015
    %1017 = vrot.lane.b32.xlu0 %v991, 112
    %v1018 = vpop.permute.xlu0 %1017
    %1019 = vrot.lane.b32.xlu0 %v992, 112
    %v1020 = vpop.permute.xlu0 %1019
    %1021 = vrot.lane.b32.xlu0 %v977, 112
    %v1022 = vpop.permute.xlu0 %1021
    %1023 = vrot.lane.b32.xlu0 %v978, 112
    %v1024 = vpop.permute.xlu0 %1023
    %1025 = vmatprep.subr.mxu0 0.0
    %1026 = vmatpush1.msra.mxu0 %v992
    %1027 = vmatprep.subr.mxu0 0.0
    %1028 = vmatpush1.msra.mxu0 %v991
    %1029 = vmatprep.subr.mxu0 0.0
    %1030 = vmatpush1.msra.mxu0 %v990
    %1031 = vmatprep.subr.mxu0 0.0
    %1032 = vmatpush1.msra.mxu0 %v989
    %1033 = vmatprep.subr.mxu0 0.0
    %1034 = vmatpush1.msra.mxu0 %v988
    %1035 = vmatprep.subr.mxu0 0.0
    %1036 = vmatpush1.msra.mxu0 %v987
    %1037 = vmatprep.subr.mxu0 0.0
    %1038 = vmatpush1.msra.mxu0 %v986
    %1039 = vmatprep.subr.mxu0 0.0
    %1040 = vmatpush1.msra.mxu0 %v985
    %1041 = vmatprep.subr.mxu0 0.0
    %1042 = vmatpush1.msra.mxu0 %v984
    %1043 = vmatprep.subr.mxu0 0.0
    %1044 = vmatpush1.msra.mxu0 %v983
    %1045 = vmatprep.subr.mxu0 0.0
    %1046 = vmatpush1.msra.mxu0 %v982
    %1047 = vmatprep.subr.mxu0 0.0
    %1048 = vmatpush1.msra.mxu0 %v981
    %1049 = vmatprep.subr.mxu0 0.0
    %1050 = vmatpush1.msra.mxu0 %v980
    %1051 = vmatprep.subr.mxu0 0.0
    %1052 = vmatpush1.msra.mxu0 %v979
    %1053 = vmatprep.subr.mxu0 0.0
    %1054 = vmatpush1.msra.mxu0 %v978
    %1055 = vmatprep.subr.mxu0 0.0
    %1056 = vmatpush1.msra.mxu0 %v977
    %1057 = vmatprep.subr.mxu0 0.0
    %1058 = vmatpush2.msra.mxu0 0.0
    %1059 = vmatprep.subr.mxu0 0.0
    %1060 = vmatpush2.msra.mxu0 0.0
    %1061 = vmatprep.subr.mxu0 0.0
    %1062 = vmatpush2.msra.mxu0 0.0
    %1063 = vmatprep.subr.mxu0 0.0
    %1064 = vmatpush2.msra.mxu0 0.0
    %1065 = vmatprep.subr.mxu0 0.0
    %1066 = vmatpush2.msra.mxu0 0.0
    %1067 = vmatprep.subr.mxu0 0.0
    %1068 = vmatpush2.msra.mxu0 0.0
    %1069 = vmatprep.subr.mxu0 0.0
    %1070 = vmatpush2.msra.mxu0 0.0
    %1071 = vmatprep.subr.mxu0 0.0
    %1072 = vmatpush2.msra.mxu0 0.0
    %1073 = vmatprep.subr.mxu0 0.0
    %1074 = vmatpush2.msra.mxu0 0.0
    %1075 = vmatprep.subr.mxu0 0.0
    %1076 = vmatpush2.msra.mxu0 0.0
    %1077 = vmatprep.subr.mxu0 0.0
    %1078 = vmatpush2.msra.mxu0 0.0
    %1079 = vmatprep.subr.mxu0 0.0
    %1080 = vmatpush2.msra.mxu0 0.0
    %1081 = vmatprep.subr.mxu0 0.0
    %1082 = vmatpush2.msra.mxu0 0.0
    %1083 = vmatprep.subr.mxu0 0.0
    %1084 = vmatpush2.msra.mxu0 0.0
    %1085 = vmatprep.subr.mxu0 0.0
    %1086 = vmatpush2.msra.mxu0 0.0
    %1087 = vmatprep.subr.mxu0 0.0
    %1088 = vmatpush2.msra.mxu0 0.0
    %1089 = vmatprep.mubr.f32.mxu0 0.0
    %1090 = vmatmul.mubr.f32.gmra.mxu0 %v994
    %v1091 = vpop.f32.mrf.mxu0
    %v1092 = vadd.f32 0.0, %v1091
    %v1093 = vpop.f32.mrf.mxu0
    %1094 = vmatprep.mubr.f32.mxu0 0.0
    %1095 = vmatmul.mubr.f32.gmra.mxu0 %v996
    %v1096 = vpop.f32.mrf.mxu0
    %v1097 = vadd.f32 0.0, %v1096
    %v1098 = vpop.f32.mrf.mxu0
    %1099 = vmatprep.mubr.f32.mxu0 0.0
    %1100 = vmatmul.mubr.f32.gmra.mxu0 %v998
    %v1101 = vpop.f32.mrf.mxu0
    %v1102 = vadd.f32 0.0, %v1101
    %v1103 = vpop.f32.mrf.mxu0
    %1104 = vmatprep.mubr.f32.mxu0 0.0
    %1105 = vmatmul.mubr.f32.gmra.mxu0 %v1000
    %v1106 = vpop.f32.mrf.mxu0
    %v1107 = vadd.f32 0.0, %v1106
    %v1108 = vpop.f32.mrf.mxu0
    %1109 = vmatprep.mubr.f32.mxu0 0.0
    %1110 = vmatmul.mubr.f32.gmra.mxu0 %v1002
    %v1111 = vpop.f32.mrf.mxu0
    %v1112 = vadd.f32 0.0, %v1111
    %v1113 = vpop.f32.mrf.mxu0
    %1114 = vmatprep.mubr.f32.mxu0 0.0
    %1115 = vmatmul.mubr.f32.gmra.mxu0 %v1004
    %v1116 = vpop.f32.mrf.mxu0
    %v1117 = vadd.f32 0.0, %v1116
    %v1118 = vpop.f32.mrf.mxu0
    %1119 = vmatprep.mubr.f32.mxu0 0.0
    %1120 = vmatmul.mubr.f32.gmra.mxu0 %v1006
    %v1121 = vpop.f32.mrf.mxu0
    %v1122 = vadd.f32 0.0, %v1121
    %v1123 = vpop.f32.mrf.mxu0
    %1124 = vmatprep.mubr.f32.mxu0 0.0
    %1125 = vmatmul.mubr.f32.gmra.mxu0 %v1008
    %v1126 = vpop.f32.mrf.mxu0
    %v1127 = vadd.f32 0.0, %v1126
    %v1128 = vpop.f32.mrf.mxu0
    %1129 = vmatprep.mubr.f32.mxu0 0.0
    %1130 = vmatmul.mubr.f32.gmra.mxu0 %v1010
    %v1131 = vpop.f32.mrf.mxu0
    %v1132 = vadd.f32 0.0, %v1131
    %v1133 = vpop.f32.mrf.mxu0
    %1134 = vmatprep.mubr.f32.mxu0 0.0
    %1135 = vmatmul.mubr.f32.gmra.mxu0 %v1012
    %v1136 = vpop.f32.mrf.mxu0
    %v1137 = vadd.f32 0.0, %v1136
    %v1138 = vpop.f32.mrf.mxu0
    %1139 = vmatprep.mubr.f32.mxu0 0.0
    %1140 = vmatmul.mubr.f32.gmra.mxu0 %v1014
    %v1141 = vpop.f32.mrf.mxu0
    %v1142 = vadd.f32 0.0, %v1141
    %v1143 = vpop.f32.mrf.mxu0
    %1144 = vmatprep.mubr.f32.mxu0 0.0
    %1145 = vmatmul.mubr.f32.gmra.mxu0 %v1016
    %v1146 = vpop.f32.mrf.mxu0
    %v1147 = vadd.f32 0.0, %v1146
    %v1148 = vpop.f32.mrf.mxu0
    %1149 = vmatprep.mubr.f32.mxu0 0.0
    %1150 = vmatmul.mubr.f32.gmra.mxu0 %v1018
    %v1151 = vpop.f32.mrf.mxu0
    %v1152 = vadd.f32 0.0, %v1151
    %v1153 = vpop.f32.mrf.mxu0
    %1154 = vmatprep.mubr.f32.mxu0 0.0
    %1155 = vmatmul.mubr.f32.gmra.mxu0 %v1020
    %v1156 = vpop.f32.mrf.mxu0
    %v1157 = vadd.f32 0.0, %v1156
    %v1158 = vpop.f32.mrf.mxu0
    %1159 = vmatprep.mubr.f32.mxu0 0.0
    %1160 = vmatmul.mubr.f32.gmra.mxu0 %v1022
    %v1161 = vpop.f32.mrf.mxu0
    %v1162 = vadd.f32 0.0, %v1161
    %v1163 = vpop.f32.mrf.mxu0
    %1164 = vmatprep.mubr.f32.mxu0 0.0
    %1165 = vmatmul.mubr.f32.gmra.mxu0 %v1024
    %v1166 = vpop.f32.mrf.mxu0
    %v1167 = vadd.f32 0.0, %v1166
    %v1168 = vpop.f32.mrf.mxu0
    %1169 = vdwg.mxu0
    %1170 = vrot.lane.b32.xlu0 %v1112, 96
    %v1171 = vpop.permute.xlu0 %1170
    %1172 = vrot.lane.b32.xlu0 %v1117, 96
    %v1173 = vpop.permute.xlu0 %1172
    %1174 = vrot.lane.b32.xlu0 %v1122, 96
    %v1175 = vpop.permute.xlu0 %1174
    %1176 = vrot.lane.b32.xlu0 %v1127, 96
    %v1177 = vpop.permute.xlu0 %1176
    %1178 = vrot.lane.b32.xlu0 %v1132, 96
    %v1179 = vpop.permute.xlu0 %1178
    %1180 = vrot.lane.b32.xlu0 %v1137, 96
    %v1181 = vpop.permute.xlu0 %1180
    %1182 = vrot.lane.b32.xlu0 %v1142, 96
    %v1183 = vpop.permute.xlu0 %1182
    %1184 = vrot.lane.b32.xlu0 %v1147, 96
    %v1185 = vpop.permute.xlu0 %1184
    %1186 = vrot.lane.b32.xlu0 %v1152, 96
    %v1187 = vpop.permute.xlu0 %1186
    %1188 = vrot.lane.b32.xlu0 %v1157, 96
    %v1189 = vpop.permute.xlu0 %1188
    %1190 = vrot.lane.b32.xlu0 %v1162, 96
    %v1191 = vpop.permute.xlu0 %1190
    %1192 = vrot.lane.b32.xlu0 %v1167, 96
    %v1193 = vpop.permute.xlu0 %1192
    %1194 = vrot.lane.b32.xlu0 %v1092, 96
    %v1195 = vpop.permute.xlu0 %1194
    %1196 = vrot.lane.b32.xlu0 %v1097, 96
    %v1197 = vpop.permute.xlu0 %1196
    %1198 = vrot.lane.b32.xlu0 %v1102, 96
    %v1199 = vpop.permute.xlu0 %1198
    %1200 = vrot.lane.b32.xlu0 %v1107, 96
    %v1201 = vpop.permute.xlu0 %1200
    %1202 = vmatprep.subr.mxu0 0.0
    %1203 = vmatpush1.msra.mxu0 %v1167
    %1204 = vmatprep.subr.mxu0 0.0
    %1205 = vmatpush1.msra.mxu0 %v1162
    %1206 = vmatprep.subr.mxu0 0.0
    %1207 = vmatpush1.msra.mxu0 %v1157
    %1208 = vmatprep.subr.mxu0 0.0
    %1209 = vmatpush1.msra.mxu0 %v1152
    %1210 = vmatprep.subr.mxu0 0.0
    %1211 = vmatpush1.msra.mxu0 %v1147
    %1212 = vmatprep.subr.mxu0 0.0
    %1213 = vmatpush1.msra.mxu0 %v1142
    %1214 = vmatprep.subr.mxu0 0.0
    %1215 = vmatpush1.msra.mxu0 %v1137
    %1216 = vmatprep.subr.mxu0 0.0
    %1217 = vmatpush1.msra.mxu0 %v1132
    %1218 = vmatprep.subr.mxu0 0.0
    %1219 = vmatpush1.msra.mxu0 %v1127
    %1220 = vmatprep.subr.mxu0 0.0
    %1221 = vmatpush1.msra.mxu0 %v1122
    %1222 = vmatprep.subr.mxu0 0.0
    %1223 = vmatpush1.msra.mxu0 %v1117
    %1224 = vmatprep.subr.mxu0 0.0
    %1225 = vmatpush1.msra.mxu0 %v1112
    %1226 = vmatprep.subr.mxu0 0.0
    %1227 = vmatpush1.msra.mxu0 %v1107
    %1228 = vmatprep.subr.mxu0 0.0
    %1229 = vmatpush1.msra.mxu0 %v1102
    %1230 = vmatprep.subr.mxu0 0.0
    %1231 = vmatpush1.msra.mxu0 %v1097
    %1232 = vmatprep.subr.mxu0 0.0
    %1233 = vmatpush1.msra.mxu0 %v1092
    %1234 = vmatprep.subr.mxu0 0.0
    %1235 = vmatpush2.msra.mxu0 0.0
    %1236 = vmatprep.subr.mxu0 0.0
    %1237 = vmatpush2.msra.mxu0 0.0
    %1238 = vmatprep.subr.mxu0 0.0
    %1239 = vmatpush2.msra.mxu0 0.0
    %1240 = vmatprep.subr.mxu0 0.0
    %1241 = vmatpush2.msra.mxu0 0.0
    %1242 = vmatprep.subr.mxu0 0.0
    %1243 = vmatpush2.msra.mxu0 0.0
    %1244 = vmatprep.subr.mxu0 0.0
    %1245 = vmatpush2.msra.mxu0 0.0
    %1246 = vmatprep.subr.mxu0 0.0
    %1247 = vmatpush2.msra.mxu0 0.0
    %1248 = vmatprep.subr.mxu0 0.0
    %1249 = vmatpush2.msra.mxu0 0.0
    %1250 = vmatprep.subr.mxu0 0.0
    %1251 = vmatpush2.msra.mxu0 0.0
    %1252 = vmatprep.subr.mxu0 0.0
    %1253 = vmatpush2.msra.mxu0 0.0
    %1254 = vmatprep.subr.mxu0 0.0
    %1255 = vmatpush2.msra.mxu0 0.0
    %1256 = vmatprep.subr.mxu0 0.0
    %1257 = vmatpush2.msra.mxu0 0.0
    %1258 = vmatprep.subr.mxu0 0.0
    %1259 = vmatpush2.msra.mxu0 0.0
    %1260 = vmatprep.subr.mxu0 0.0
    %1261 = vmatpush2.msra.mxu0 0.0
    %1262 = vmatprep.subr.mxu0 0.0
    %1263 = vmatpush2.msra.mxu0 0.0
    %1264 = vmatprep.subr.mxu0 0.0
    %1265 = vmatpush2.msra.mxu0 0.0
    %1266 = vmatprep.mubr.f32.mxu0 0.0
    %1267 = vmatmul.mubr.f32.gmra.mxu0 %v1171
    %v1268 = vpop.f32.mrf.mxu0
    %v1269 = vadd.f32 0.0, %v1268
    %v1270 = vpop.f32.mrf.mxu0
    %1271 = vmatprep.mubr.f32.mxu0 0.0
    %1272 = vmatmul.mubr.f32.gmra.mxu0 %v1173
    %v1273 = vpop.f32.mrf.mxu0
    %v1274 = vadd.f32 0.0, %v1273
    %v1275 = vpop.f32.mrf.mxu0
    %1276 = vmatprep.mubr.f32.mxu0 0.0
    %1277 = vmatmul.mubr.f32.gmra.mxu0 %v1175
    %v1278 = vpop.f32.mrf.mxu0
    %v1279 = vadd.f32 0.0, %v1278
    %v1280 = vpop.f32.mrf.mxu0
    %1281 = vmatprep.mubr.f32.mxu0 0.0
    %1282 = vmatmul.mubr.f32.gmra.mxu0 %v1177
    %v1283 = vpop.f32.mrf.mxu0
    %v1284 = vadd.f32 0.0, %v1283
    %v1285 = vpop.f32.mrf.mxu0
    %1286 = vmatprep.mubr.f32.mxu0 0.0
    %1287 = vmatmul.mubr.f32.gmra.mxu0 %v1179
    %v1288 = vpop.f32.mrf.mxu0
    %v1289 = vadd.f32 0.0, %v1288
    %v1290 = vpop.f32.mrf.mxu0
    %1291 = vmatprep.mubr.f32.mxu0 0.0
    %1292 = vmatmul.mubr.f32.gmra.mxu0 %v1181
    %v1293 = vpop.f32.mrf.mxu0
    %v1294 = vadd.f32 0.0, %v1293
    %v1295 = vpop.f32.mrf.mxu0
    %1296 = vmatprep.mubr.f32.mxu0 0.0
    %1297 = vmatmul.mubr.f32.gmra.mxu0 %v1183
    %v1298 = vpop.f32.mrf.mxu0
    %v1299 = vadd.f32 0.0, %v1298
    %v1300 = vpop.f32.mrf.mxu0
    %1301 = vmatprep.mubr.f32.mxu0 0.0
    %1302 = vmatmul.mubr.f32.gmra.mxu0 %v1185
    %v1303 = vpop.f32.mrf.mxu0
    %v1304 = vadd.f32 0.0, %v1303
    %v1305 = vpop.f32.mrf.mxu0
    %1306 = vmatprep.mubr.f32.mxu0 0.0
    %1307 = vmatmul.mubr.f32.gmra.mxu0 %v1187
    %v1308 = vpop.f32.mrf.mxu0
    %v1309 = vadd.f32 0.0, %v1308
    %v1310 = vpop.f32.mrf.mxu0
    %1311 = vmatprep.mubr.f32.mxu0 0.0
    %1312 = vmatmul.mubr.f32.gmra.mxu0 %v1189
    %v1313 = vpop.f32.mrf.mxu0
    %v1314 = vadd.f32 0.0, %v1313
    %v1315 = vpop.f32.mrf.mxu0
    %1316 = vmatprep.mubr.f32.mxu0 0.0
    %1317 = vmatmul.mubr.f32.gmra.mxu0 %v1191
    %v1318 = vpop.f32.mrf.mxu0
    %v1319 = vadd.f32 0.0, %v1318
    %v1320 = vpop.f32.mrf.mxu0
    %1321 = vmatprep.mubr.f32.mxu0 0.0
    %1322 = vmatmul.mubr.f32.gmra.mxu0 %v1193
    %v1323 = vpop.f32.mrf.mxu0
    %v1324 = vadd.f32 0.0, %v1323
    %v1325 = vpop.f32.mrf.mxu0
    %1326 = vmatprep.mubr.f32.mxu0 0.0
    %1327 = vmatmul.mubr.f32.gmra.mxu0 %v1195
    %v1328 = vpop.f32.mrf.mxu0
    %v1329 = vadd.f32 0.0, %v1328
    %v1330 = vpop.f32.mrf.mxu0
    %1331 = vmatprep.mubr.f32.mxu0 0.0
    %1332 = vmatmul.mubr.f32.gmra.mxu0 %v1197
    %v1333 = vpop.f32.mrf.mxu0
    %v1334 = vadd.f32 0.0, %v1333
    %v1335 = vpop.f32.mrf.mxu0
    %1336 = vmatprep.mubr.f32.mxu0 0.0
    %1337 = vmatmul.mubr.f32.gmra.mxu0 %v1199
    %v1338 = vpop.f32.mrf.mxu0
    %v1339 = vadd.f32 0.0, %v1338
    %v1340 = vpop.f32.mrf.mxu0
    %1341 = vmatprep.mubr.f32.mxu0 0.0
    %1342 = vmatmul.mubr.f32.gmra.mxu0 %v1201
    %v1343 = vpop.f32.mrf.mxu0
    %v1344 = vadd.f32 0.0, %v1343
    %v1345 = vpop.f32.mrf.mxu0
    %1346 = vdwg.mxu0
    %1347 = vrot.lane.b32.xlu0 %v1309, 64
    %v1348 = vpop.permute.xlu0 %1347
    %1349 = vrot.lane.b32.xlu0 %v1314, 64
    %v1350 = vpop.permute.xlu0 %1349
    %1351 = vrot.lane.b32.xlu0 %v1319, 64
    %v1352 = vpop.permute.xlu0 %1351
    %1353 = vrot.lane.b32.xlu0 %v1324, 64
    %v1354 = vpop.permute.xlu0 %1353
    %1355 = vrot.lane.b32.xlu0 %v1329, 64
    %v1356 = vpop.permute.xlu0 %1355
    %1357 = vrot.lane.b32.xlu0 %v1334, 64
    %v1358 = vpop.permute.xlu0 %1357
    %1359 = vrot.lane.b32.xlu0 %v1339, 64
    %v1360 = vpop.permute.xlu0 %1359
    %1361 = vrot.lane.b32.xlu0 %v1344, 64
    %v1362 = vpop.permute.xlu0 %1361
    %1363 = vrot.lane.b32.xlu0 %v1269, 64
    %v1364 = vpop.permute.xlu0 %1363
    %1365 = vrot.lane.b32.xlu0 %v1274, 64
    %v1366 = vpop.permute.xlu0 %1365
    %1367 = vrot.lane.b32.xlu0 %v1279, 64
    %v1368 = vpop.permute.xlu0 %1367
    %1369 = vrot.lane.b32.xlu0 %v1284, 64
    %v1370 = vpop.permute.xlu0 %1369
    %1371 = vrot.lane.b32.xlu0 %v1289, 64
    %v1372 = vpop.permute.xlu0 %1371
    %1373 = vrot.lane.b32.xlu0 %v1294, 64
    %v1374 = vpop.permute.xlu0 %1373
    %1375 = vrot.lane.b32.xlu0 %v1299, 64
    %v1376 = vpop.permute.xlu0 %1375
    %1377 = vrot.lane.b32.xlu0 %v1304, 64
    %v1378 = vpop.permute.xlu0 %1377
    %1379 = vmatprep.subr.mxu0 0.0
    %1380 = vmatpush1.msra.mxu0 %v1344
    %1381 = vmatprep.subr.mxu0 0.0
    %1382 = vmatpush1.msra.mxu0 %v1339
    %1383 = vmatprep.subr.mxu0 0.0
    %1384 = vmatpush1.msra.mxu0 %v1334
    %1385 = vmatprep.subr.mxu0 0.0
    %1386 = vmatpush1.msra.mxu0 %v1329
    %1387 = vmatprep.subr.mxu0 0.0
    %1388 = vmatpush1.msra.mxu0 %v1324
    %1389 = vmatprep.subr.mxu0 0.0
    %1390 = vmatpush1.msra.mxu0 %v1319
    %1391 = vmatprep.subr.mxu0 0.0
    %1392 = vmatpush1.msra.mxu0 %v1314
    %1393 = vmatprep.subr.mxu0 0.0
    %1394 = vmatpush1.msra.mxu0 %v1309
    %1395 = vmatprep.subr.mxu0 0.0
    %1396 = vmatpush1.msra.mxu0 %v1304
    %1397 = vmatprep.subr.mxu0 0.0
    %1398 = vmatpush1.msra.mxu0 %v1299
    %1399 = vmatprep.subr.mxu0 0.0
    %1400 = vmatpush1.msra.mxu0 %v1294
    %1401 = vmatprep.subr.mxu0 0.0
    %1402 = vmatpush1.msra.mxu0 %v1289
    %1403 = vmatprep.subr.mxu0 0.0
    %1404 = vmatpush1.msra.mxu0 %v1284
    %1405 = vmatprep.subr.mxu0 0.0
    %1406 = vmatpush1.msra.mxu0 %v1279
    %1407 = vmatprep.subr.mxu0 0.0
    %1408 = vmatpush1.msra.mxu0 %v1274
    %1409 = vmatprep.subr.mxu0 0.0
    %1410 = vmatpush1.msra.mxu0 %v1269
    %1411 = vmatprep.subr.mxu0 0.0
    %1412 = vmatpush2.msra.mxu0 0.0
    %1413 = vmatprep.subr.mxu0 0.0
    %1414 = vmatpush2.msra.mxu0 0.0
    %1415 = vmatprep.subr.mxu0 0.0
    %1416 = vmatpush2.msra.mxu0 0.0
    %1417 = vmatprep.subr.mxu0 0.0
    %1418 = vmatpush2.msra.mxu0 0.0
    %1419 = vmatprep.subr.mxu0 0.0
    %1420 = vmatpush2.msra.mxu0 0.0
    %1421 = vmatprep.subr.mxu0 0.0
    %1422 = vmatpush2.msra.mxu0 0.0
    %1423 = vmatprep.subr.mxu0 0.0
    %1424 = vmatpush2.msra.mxu0 0.0
    %1425 = vmatprep.subr.mxu0 0.0
    %1426 = vmatpush2.msra.mxu0 0.0
    %1427 = vmatprep.subr.mxu0 0.0
    %1428 = vmatpush2.msra.mxu0 0.0
    %1429 = vmatprep.subr.mxu0 0.0
    %1430 = vmatpush2.msra.mxu0 0.0
    %1431 = vmatprep.subr.mxu0 0.0
    %1432 = vmatpush2.msra.mxu0 0.0
    %1433 = vmatprep.subr.mxu0 0.0
    %1434 = vmatpush2.msra.mxu0 0.0
    %1435 = vmatprep.subr.mxu0 0.0
    %1436 = vmatpush2.msra.mxu0 0.0
    %1437 = vmatprep.subr.mxu0 0.0
    %1438 = vmatpush2.msra.mxu0 0.0
    %1439 = vmatprep.subr.mxu0 0.0
    %1440 = vmatpush2.msra.mxu0 0.0
    %1441 = vmatprep.subr.mxu0 0.0
    %1442 = vmatpush2.msra.mxu0 0.0
    %1443 = vmatprep.mubr.f32.mxu0 0.0
    %1444 = vmatmul.mubr.f32.gmra.mxu0 %v1348
    %v1445 = vpop.f32.mrf.mxu0
    %v1446 = vadd.f32 0.0, %v1445
    %v1447 = vpop.f32.mrf.mxu0
    %1448 = vmatprep.mubr.f32.mxu0 0.0
    %1449 = vmatmul.mubr.f32.gmra.mxu0 %v1350
    %v1450 = vpop.f32.mrf.mxu0
    %v1451 = vadd.f32 0.0, %v1450
    %v1452 = vpop.f32.mrf.mxu0
    %1453 = vmatprep.mubr.f32.mxu0 0.0
    %1454 = vmatmul.mubr.f32.gmra.mxu0 %v1352
    %v1455 = vpop.f32.mrf.mxu0
    %v1456 = vpop.f32.mrf.mxu0
    %1457 = vmatprep.mubr.f32.mxu0 0.0
    %1458 = vmatmul.mubr.f32.gmra.mxu0 %v1354
    %v1459 = vpop.f32.mrf.mxu0
    %v1460 = vpop.f32.mrf.mxu0
    %1461 = vmatprep.mubr.f32.mxu0 0.0
    %1462 = vmatmul.mubr.f32.gmra.mxu0 %v1356
    %v1463 = vpop.f32.mrf.mxu0
    %v1464 = vpop.f32.mrf.mxu0
    %1465 = vmatprep.mubr.f32.mxu0 0.0
    %1466 = vmatmul.mubr.f32.gmra.mxu0 %v1358
    %v1467 = vpop.f32.mrf.mxu0
    %v1468 = vpop.f32.mrf.mxu0
    %1469 = vmatprep.mubr.f32.mxu0 0.0
    %1470 = vmatmul.mubr.f32.gmra.mxu0 %v1360
    %v1471 = vpop.f32.mrf.mxu0
    %v1472 = vpop.f32.mrf.mxu0
    %1473 = vmatprep.mubr.f32.mxu0 0.0
    %1474 = vmatmul.mubr.f32.gmra.mxu0 %v1362
    %v1475 = vpop.f32.mrf.mxu0
    %v1476 = vpop.f32.mrf.mxu0
    %1477 = vmatprep.mubr.f32.mxu0 0.0
    %1478 = vmatmul.mubr.f32.gmra.mxu0 %v1364
    %v1479 = vpop.f32.mrf.mxu0
    %v1480 = vpop.f32.mrf.mxu0
    %1481 = vmatprep.mubr.f32.mxu0 0.0
    %1482 = vmatmul.mubr.f32.gmra.mxu0 %v1366
    %v1483 = vpop.f32.mrf.mxu0
    %v1484 = vpop.f32.mrf.mxu0
    %1485 = vmatprep.mubr.f32.mxu0 0.0
    %1486 = vmatmul.mubr.f32.gmra.mxu0 %v1368
    %v1487 = vpop.f32.mrf.mxu0
    %v1488 = vpop.f32.mrf.mxu0
    %1489 = vmatprep.mubr.f32.mxu0 0.0
    %1490 = vmatmul.mubr.f32.gmra.mxu0 %v1370
    %v1491 = vpop.f32.mrf.mxu0
    %v1492 = vpop.f32.mrf.mxu0
    %1493 = vmatprep.mubr.f32.mxu0 0.0
    %1494 = vmatmul.mubr.f32.gmra.mxu0 %v1372
    %v1495 = vpop.f32.mrf.mxu0
    %v1496 = vpop.f32.mrf.mxu0
    %1497 = vmatprep.mubr.f32.mxu0 0.0
    %1498 = vmatmul.mubr.f32.gmra.mxu0 %v1374
    %v1499 = vpop.f32.mrf.mxu0
    %v1500 = vpop.f32.mrf.mxu0
    %1501 = vmatprep.mubr.f32.mxu0 0.0
    %1502 = vmatmul.mubr.f32.gmra.mxu0 %v1376
    %v1503 = vpop.f32.mrf.mxu0
    %v1504 = vpop.f32.mrf.mxu0
    %1505 = vmatprep.mubr.f32.mxu0 0.0
    %1506 = vmatmul.mubr.f32.gmra.mxu0 %v1378
    %v1507 = vpop.f32.mrf.mxu0
    %v1508 = vpop.f32.mrf.mxu0
    %1509 = vdwg.mxu0
    %1510 = vst [vmem:[#allocation5] sm:$0xff] %v1446
    %1511 = vst [vmem:[#allocation5 + $0x8] sm:$0xff] %v1451
    // Predicated region
    $region18: #{tpu_custom_call.1} parent=1 // pred_check
      _
    $region19: #{tpu_custom_call.1} parent=1 // pred_check_branch
      %1513 = sbr.rel (0) target = $region21
    $region20: #{tpu_custom_call.1} parent=1 // pred_region
      %s1515 = ssub.s32 256, 256
      %1516 = vsyncadd [#allocation4], %s1515
      %s1517 = sshll.u32 [#allocation5], 4
      %s1518 = int_to_ptr.vmem [resolvable:$true] %s1517
      %1523 = dma.vmem_to_hbm [thread:$0]  %s1518, 256, %s3, [#allocation4], 128, 128, 8
    $region21: #{tpu_custom_call.1} parent=1 // pred_fallthru
      _
    // Predicated region
    $region22: #{tpu_custom_call.1} parent=1 // pred_check
      _
    $region23: #{tpu_custom_call.1} parent=1 // pred_check_branch
      %1525 = sbr.rel (0) target = $region25
    $region24: #{tpu_custom_call.1} parent=1 // pred_region
      %1526 = dma.done [#allocation4], 256
    $region25: #{tpu_custom_call.1} parent=1 // pred_fallthru
      _
    %1527 = vsyncpa [#allocation3], 1
    %1528 = vsyncpa [#allocation4], 1

</llo_original>
